<compile_context>
chip_gen: v5e
topology: v5e:2x2
jax: 0.10.0
libtpu: 0.0.40
codegen_flags: <defaults>
</compile_context>

<pallas_src>
import jax
import jax.numpy as jnp
from jax.experimental import pallas as pl
from jax.experimental.pallas import tpu as pltpu

_EPS = 1e-12  # F.normalize clamps the denominator at 1e-12


def _cdiv(a, b):
    return -(-a // b)


def _round_up(n, m):
    return _cdiv(n, m) * m


def _tpu_info():
    """(vmem_capacity_bytes, lane_pad_multiple, device_kind_lower)."""
    vmem_cap = None
    try:
        vmem_cap = int(pltpu.get_tpu_info().vmem_capacity_bytes)
    except Exception:
        vmem_cap = None
    kind = ""
    try:
        kind = jax.devices()[0].device_kind.lower()
    except Exception:
        kind = ""
    if vmem_cap is None or vmem_cap <= 0:
        vmem_cap = (64 << 20) if "v7" in kind else (128 << 20)
    if "v7" in kind:
        # 64 MiB per TensorCore on v7x regardless of what the query reports.
        vmem_cap = min(vmem_cap, 64 << 20)
    # MXU native tile: 128 on <= v5 generations, 256 on v6e / v7x.
    old_gen = any(tag in kind for tag in ("v2", "v3", "v4", "v5"))
    lane_mult = 128 if old_gen else 256
    return vmem_cap, lane_mult, kind


# --------------------------------------------------------------------------
# Kernels
# --------------------------------------------------------------------------

def _ff_kernel_resident(x_ref, wh_ref, wg_ref, wo_ref, hs_ref, gs_ref, o_ref):
    """All weights VMEM-resident; one grid axis over row tiles."""
    x = x_ref[...].astype(wh_ref.dtype)                                   # (tm, Dp)

    hidden = jnp.dot(x, wh_ref[...], preferred_element_type=jnp.float32)  # (tm, Dip)
    gate = jnp.dot(x, wg_ref[...], preferred_element_type=jnp.float32)    # (tm, Dip)

    # Weight-norm factors, Scale() and sqrt(dim) are pre-folded into hs/gs.
    hidden = hidden * hs_ref[...]
    gate = gate * gs_ref[...]

    pre = (gate * jax.nn.sigmoid(gate) * hidden).astype(wo_ref.dtype)
    out = jnp.dot(pre, wo_ref[...], preferred_element_type=jnp.float32)   # (tm, Dp)
    o_ref[...] = out.astype(o_ref.dtype)


def _ff_kernel_streamed(x_ref, wh_ref, wg_ref, wo_ref, hs_ref, gs_ref, o_ref,
                        acc_ref):
    """Di-tiled reduction: weights streamed along the inner-channel axis."""
    k = pl.program_id(1)

    @pl.when(k == 0)
    def _():
        acc_ref[...] = jnp.zeros_like(acc_ref)

    x = x_ref[...].astype(wh_ref.dtype)                                    # (tm, Dp)
    hidden = jnp.dot(x, wh_ref[...], preferred_element_type=jnp.float32)   # (tm, tdi)
    gate = jnp.dot(x, wg_ref[...], preferred_element_type=jnp.float32)     # (tm, tdi)
    hidden = hidden * hs_ref[...]
    gate = gate * gs_ref[...]
    pre = (gate * jax.nn.sigmoid(gate) * hidden).astype(wo_ref.dtype)
    acc_ref[...] += jnp.dot(pre, wo_ref[...],
                            preferred_element_type=jnp.float32)            # (tm, Dp)

    @pl.when(k == pl.num_programs(1) - 1)
    def _():
        o_ref[...] = acc_ref[...].astype(o_ref.dtype)


# --------------------------------------------------------------------------
# Hoisted weight preprocessing (run once per weight update, not per forward)
# --------------------------------------------------------------------------

def prepare_ngpt_ff_params(w_hidden, w_gate, w_out, hidden_scale, gate_scale,
                           *, compute_dtype=jnp.bfloat16, tdi_target=512,
                           force_streamed=False):
    """Fold NormLinear L2-norms + Scale() into per-channel vectors, and
    pre-transpose / pad / cast the raw weights to the MXU-canonical layout."""
    Di, D = w_hidden.shape
    vmem_cap, lane_mult, kind = _tpu_info()
    compute_dtype = jnp.dtype(compute_dtype)

    f32 = jnp.float32
    wh = w_hidden.astype(f32)            # (Di, D)
    wg = w_gate.astype(f32)              # (Di, D)
    wo = w_out.astype(f32)               # (D, Di)

    # One-time L2-norm factors (norm over dim_in rows for W_h/W_g, over
    # dim_in columns for W_out), folded with Scale() and sqrt(dim).
    inv_h = 1.0 / jnp.maximum(jnp.sqrt(jnp.sum(wh * wh, axis=-1)), _EPS)   # (Di,)
    inv_g = 1.0 / jnp.maximum(jnp.sqrt(jnp.sum(wg * wg, axis=-1)), _EPS)   # (Di,)
    inv_o = 1.0 / jnp.maximum(jnp.sqrt(jnp.sum(wo * wo, axis=0)), _EPS)    # (Di,)
    hs = hidden_scale.astype(f32) * inv_h * inv_o                          # (Di,)
    gs = gate_scale.astype(f32) * inv_g * (float(D) ** 0.5)                # (Di,)

    Dp = _round_up(D, lane_mult)
    Dip0 = _round_up(Di, lane_mult)
    w_bytes = compute_dtype.itemsize

    # Resident weights only if the three (single-buffered) matrices leave
    # ample headroom for activation tiles + compiler scratch.
    resident = (not force_streamed) and (3 * Dp * Dip0 * w_bytes
                                         <= int(0.55 * vmem_cap))
    if resident:
        nk, tdi, Dip = 1, Dip0, Dip0
    else:
        nk = max(1, _cdiv(Dip0, tdi_target))
        tdi = _round_up(_cdiv(Dip0, nk), lane_mult)
        Dip = nk * tdi

    # Transpose / pad on the compute-dtype copy (not the f32 one).
    wh_t = jnp.pad(w_hidden.astype(compute_dtype).T,
                   ((0, Dp - D), (0, Dip - Di)))                 # (Dp, Dip)
    wg_t = jnp.pad(w_gate.astype(compute_dtype).T,
                   ((0, Dp - D), (0, Dip - Di)))                 # (Dp, Dip)
    wo_t = jnp.pad(w_out.astype(compute_dtype).T,
                   ((0, Dip - Di), (0, Dp - D)))                 # (Dip, Dp)
    hs_p = jnp.pad(hs, (0, Dip - Di)).reshape(1, Dip)
    gs_p = jnp.pad(gs, (0, Dip - Di)).reshape(1, Dip)

    return dict(wh_t=wh_t, wg_t=wg_t, wo_t=wo_t, hs=hs_p, gs=gs_p,
                D=D, Di=Di, Dp=Dp, Dip=Dip, tdi=tdi, nk=nk,
                resident=resident, vmem_cap=vmem_cap,
                device_kind=kind, compute_dtype=compute_dtype)


# --------------------------------------------------------------------------
# Forward
# --------------------------------------------------------------------------

def _const_block_spec(shape, single_buffer):
    idx = lambda *_: (0,) * len(shape)
    if single_buffer:
        return pl.BlockSpec(shape, idx, pipeline_mode=pl.Buffered(1))
    return pl.BlockSpec(shape, idx)


def _pallas_ff_call(kernel, out_shape, grid, in_specs_options, out_specs,
                    scratch_shapes, dims, vmem_limit, args):
    last_exc = None
    for in_specs in in_specs_options:
        try:
            fn = pl.pallas_call(
                kernel,
                out_shape=out_shape,
                grid_spec=pltpu.PrefetchScalarGridSpec(
                    num_scalar_prefetch=0,
                    grid=grid,
                    in_specs=in_specs,
                    out_specs=out_specs,
                    scratch_shapes=scratch_shapes),
                compiler_params=pltpu.CompilerParams(
                    dimension_semantics=dims,
                    vmem_limit_bytes=vmem_limit),
            )
            return fn(*args)
        except Exception as exc:   # defensive: retry without Buffered(1)
            last_exc = exc
    raise last_exc


def ngpt_feedforward_prepared(x, params, *, tm=512):
    """x: (..., D) with D == params['D'].  Returns the same shape/dtype."""
    D = params["D"]
    assert x.shape[-1] == D
    Dp, Dip, tdi, nk = params["Dp"], params["Dip"], params["tdi"], params["nk"]
    out_dtype = x.dtype

    x2 = x.reshape(-1, D)
    M = x2.shape[0]
    if Dp != D:
        x2 = jnp.pad(x2, ((0, 0), (0, Dp - D)))   # zero-pad lanes (correctness)

    # Row tile: multiple of 16 (bf16 sublane packing), clamped to the row
    # count; on v7x make sure the "parallel" axis has >= 2 tiles if possible.
    row_g = 16
    tm = max(row_g, min(int(tm), _round_up(M, row_g)))
    tm = _round_up(tm, row_g)
    if "v7" in params["device_kind"] and _cdiv(M, tm) < 2 and M > 2 * row_g:
        tm = _round_up(_cdiv(M, 2), row_g)
    n_row_tiles = _cdiv(M, tm)

    x_bytes = jnp.dtype(x2.dtype).itemsize
    o_bytes = jnp.dtype(out_dtype).itemsize
    w_bytes = params["compute_dtype"].itemsize
    vmem_cap = params["vmem_cap"]

    args = (x2, params["wh_t"], params["wg_t"], params["wo_t"],
            params["hs"], params["gs"])
    out_shape = jax.ShapeDtypeStruct((M, Dp), out_dtype)

    if params["resident"]:
        est = (2 * tm * Dp * x_bytes + 2 * tm * Dp * o_bytes
               + 3 * Dp * Dip * w_bytes + 2 * Dip * 4 + (4 << 20))
        grid = (n_row_tiles,)
        dims = ("parallel",)
        out_specs = pl.BlockSpec((tm, Dp), lambda i: (i, 0))
        scratch = ()

        def specs(single_buffer):
            return [
                pl.BlockSpec((tm, Dp), lambda i: (i, 0)),               # x rows
                _const_block_spec((Dp, Dip), single_buffer),            # W_h^T
                _const_block_spec((Dp, Dip), single_buffer),            # W_g^T
                _const_block_spec((Dip, Dp), single_buffer),            # W_o^T
                _const_block_spec((1, Dip), single_buffer),             # hs
                _const_block_spec((1, Dip), single_buffer),             # gs
            ]

        in_specs_options = []
        try:
            in_specs_options.append(specs(True))
        except Exception:
            pass
        in_specs_options.append(specs(False))
        kernel = _ff_kernel_resident
    else:
        est = (2 * tm * Dp * x_bytes + 2 * tm * Dp * o_bytes + tm * Dp * 4
               + 2 * 3 * Dp * tdi * w_bytes + 2 * 2 * tdi * 4 + (4 << 20))
        grid = (n_row_tiles, nk)
        dims = ("parallel", "arbitrary")
        out_specs = pl.BlockSpec((tm, Dp), lambda i, k: (i, 0))
        scratch = (pltpu.VMEM((tm, Dp), jnp.float32),)
        in_specs_options = [[
            pl.BlockSpec((tm, Dp), lambda i, k: (i, 0)),                # x rows
            pl.BlockSpec((Dp, tdi), lambda i, k: (0, k)),               # W_h^T cols
            pl.BlockSpec((Dp, tdi), lambda i, k: (0, k)),               # W_g^T cols
            pl.BlockSpec((tdi, Dp), lambda i, k: (k, 0)),               # W_o^T rows
            pl.BlockSpec((1, tdi), lambda i, k: (0, k)),                # hs slab
            pl.BlockSpec((1, tdi), lambda i, k: (0, k)),                # gs slab
        ]]
        kernel = _ff_kernel_streamed

    vmem_limit = int(min(max(est, 24 << 20), int(0.9 * vmem_cap)))

    out = _pallas_ff_call(kernel, out_shape, grid, in_specs_options, out_specs,
                          scratch, dims, vmem_limit, args)

    if Dp != D:
        out = out[:, :D]
    return out.reshape(x.shape)


def ngpt_feedforward(x, w_hidden, w_gate, w_out, hidden_scale, gate_scale,
                     *, tm=512, compute_dtype=jnp.bfloat16):
    """Convenience one-shot wrapper (prefer caching prepare_ngpt_ff_params)."""
    params = prepare_ngpt_ff_params(w_hidden, w_gate, w_out, hidden_scale,
                                    gate_scale, compute_dtype=compute_dtype)
    return ngpt_feedforward_prepared(x, params, tm=tm)


# --------------------------------------------------------------------------
# Reference + self-check
# --------------------------------------------------------------------------

def _reference(x, w_hidden, w_gate, w_out, hidden_scale, gate_scale):
    D = x.shape[-1]
    wh_n = w_hidden / jnp.maximum(
        jnp.linalg.norm(w_hidden, axis=-1, keepdims=True), _EPS)
    wg_n = w_gate / jnp.maximum(
        jnp.linalg.norm(w_gate, axis=-1, keepdims=True), _EPS)
    wo_n = w_out / jnp.maximum(
        jnp.linalg.norm(w_out, axis=0, keepdims=True), _EPS)
    hidden = x @ wh_n.T * hidden_scale
    gate = x @ wg_n.T * gate_scale * (D ** 0.5)
    hidden = jax.nn.silu(gate) * hidden
    return hidden @ wo_n.T


if __name__ == "__main__":
    # Module config: dim=48, expand_factor=4 -> dim_inner = int(48*4*2/3) = 128
    dim = 48
    expand_factor = 4
    dim_inner = int(dim * expand_factor * 2 / 3)
    B, S = 2, 8

    key = jax.random.PRNGKey(0)
    kx, kh, kg, ko, khs, kgs = jax.random.split(key, 6)

    x = jax.random.normal(kx, (B, S, dim), dtype=jnp.float32)
    w_hidden = jax.random.normal(kh, (dim_inner, dim), dtype=jnp.float32) * 0.1
    w_gate = jax.random.normal(kg, (dim_inner, dim), dtype=jnp.float32) * 0.1
    w_out = jax.random.normal(ko, (dim, dim_inner), dtype=jnp.float32) * 0.1

    # Scale modules: forward() = param * (s_init / s_scale).
    s_hidden_init = s_hidden_scale = 1.0
    s_gate_init = s_gate_scale = 1.0
    hidden_scale_param = jnp.ones((dim_inner,), jnp.float32) * s_hidden_scale \
        + 0.01 * jax.random.normal(khs, (dim_inner,), dtype=jnp.float32)
    gate_scale_param = jnp.ones((dim_inner,), jnp.float32) * s_gate_scale \
        + 0.01 * jax.random.normal(kgs, (dim_inner,), dtype=jnp.float32)
    hidden_scale = hidden_scale_param * (s_hidden_init / s_hidden_scale)
    gate_scale = gate_scale_param * (s_gate_init / s_gate_scale)

    ref = _reference(x, w_hidden, w_gate, w_out, hidden_scale, gate_scale)
    scale_ref = float(jnp.max(jnp.abs(ref))) + 1e-6
    tol = 4e-2 * scale_ref + 1e-3   # bf16-matmul-appropriate tolerance

    # Path 1: resident-weight kernel (what small/medium models use).
    params = prepare_ngpt_ff_params(w_hidden, w_gate, w_out,
                                    hidden_scale, gate_scale)
    out = jax.block_until_ready(ngpt_feedforward_prepared(x, params))
    assert out.shape == (B, S, dim)
    err = float(jnp.max(jnp.abs(out - ref)))
    assert err <= tol, f"resident-path mismatch: max_err={err}, tol={tol}"

    # Path 2: Di-tiled streaming kernel (the v7x / large-model path), forced
    # at these tiny sizes so the accumulator variant is exercised & checked.
    params_s = prepare_ngpt_ff_params(w_hidden, w_gate, w_out,
                                      hidden_scale, gate_scale,
                                      force_streamed=True, tdi_target=128)
    out_s = jax.block_until_ready(ngpt_feedforward_prepared(x, params_s, tm=256))
    assert out_s.shape == (B, S, dim)
    err_s = float(jnp.max(jnp.abs(out_s - ref)))
    assert err_s <= tol, f"streamed-path mismatch: max_err={err_s}, tol={tol}"

    print("KERNEL_OK")
</pallas_src>

<mosaic_0001>
module attributes {stable_mosaic.version = 11 : i64} {
  func.func @_ff_kernel_resident(%arg0: i32, %arg1: memref<16x256xf32, #tpu.memory_space<vmem>>, %arg2: memref<256x256xbf16, #tpu.memory_space<vmem>>, %arg3: memref<256x256xbf16, #tpu.memory_space<vmem>>, %arg4: memref<256x256xbf16, #tpu.memory_space<vmem>>, %arg5: memref<1x256xf32, #tpu.memory_space<vmem>>, %arg6: memref<1x256xf32, #tpu.memory_space<vmem>>, %arg7: memref<16x256xf32, #tpu.memory_space<vmem>>) attributes {dimension_semantics = [#tpu.dimension_semantics<parallel>], iteration_bounds = array<i64: 1>, scalar_prefetch = 0 : i64, scratch_operands = 0 : i64, tpu.core_type = #tpu.core_type<tc>, window_params = [{transform_indices = @transform_0, window_bounds = array<i64: 16, 256>}, {pipeline_mode = #tpu.pipeline_mode<synchronous>, transform_indices = @transform_1, window_bounds = array<i64: 256, 256>}, {pipeline_mode = #tpu.pipeline_mode<synchronous>, transform_indices = @transform_2, window_bounds = array<i64: 256, 256>}, {pipeline_mode = #tpu.pipeline_mode<synchronous>, transform_indices = @transform_3, window_bounds = array<i64: 256, 256>}, {pipeline_mode = #tpu.pipeline_mode<synchronous>, transform_indices = @transform_4, window_bounds = array<i64: 1, 256>}, {pipeline_mode = #tpu.pipeline_mode<synchronous>, transform_indices = @transform_5, window_bounds = array<i64: 1, 256>}, {transform_indices = @transform_6, window_bounds = array<i64: 16, 256>}]} {
    %c0 = arith.constant 0 : index
    %c0_0 = arith.constant 0 : index
    %0 = vector.load %arg1[%c0, %c0_0] : memref<16x256xf32, #tpu.memory_space<vmem>>, vector<16x256xf32>
    %1 = arith.truncf %0 : vector<16x256xf32> to vector<16x256xbf16>
    %c0_1 = arith.constant 0 : index
    %c0_2 = arith.constant 0 : index
    %2 = vector.load %arg2[%c0_1, %c0_2] : memref<256x256xbf16, #tpu.memory_space<vmem>>, vector<256x256xbf16>
    %cst = arith.constant dense<0.000000e+00> : vector<16x256xf32>
    %3 = tpu.matmul %1, %2, %cst {dimension_numbers = #tpu.dot_dimension_numbers<[1], [0], [0], [1], [0, 0, 1, 1], [], []>} : vector<16x256xbf16>, vector<256x256xbf16>, vector<16x256xf32> -> vector<16x256xf32>
    %c0_3 = arith.constant 0 : index
    %c0_4 = arith.constant 0 : index
    %4 = vector.load %arg3[%c0_3, %c0_4] : memref<256x256xbf16, #tpu.memory_space<vmem>>, vector<256x256xbf16>
    %cst_5 = arith.constant dense<0.000000e+00> : vector<16x256xf32>
    %5 = tpu.matmul %1, %4, %cst_5 {dimension_numbers = #tpu.dot_dimension_numbers<[1], [0], [0], [1], [0, 0, 1, 1], [], []>} : vector<16x256xbf16>, vector<256x256xbf16>, vector<16x256xf32> -> vector<16x256xf32>
    %c0_6 = arith.constant 0 : index
    %c0_7 = arith.constant 0 : index
    %6 = vector.load %arg5[%c0_6, %c0_7] : memref<1x256xf32, #tpu.memory_space<vmem>>, vector<1x256xf32>
    %7 = vector.broadcast %6 : vector<1x256xf32> to vector<16x256xf32>
    %8 = arith.mulf %3, %7 : vector<16x256xf32>
    %c0_8 = arith.constant 0 : index
    %c0_9 = arith.constant 0 : index
    %9 = vector.load %arg6[%c0_8, %c0_9] : memref<1x256xf32, #tpu.memory_space<vmem>>, vector<1x256xf32>
    %10 = vector.broadcast %9 : vector<1x256xf32> to vector<16x256xf32>
    %11 = arith.mulf %5, %10 : vector<16x256xf32>
    %12 = arith.negf %11 : vector<16x256xf32>
    %13 = math.exp %12 : vector<16x256xf32>
    %cst_10 = arith.constant 1.000000e+00 : f32
    %14 = vector.broadcast %cst_10 : f32 to vector<16x256xf32>
    %15 = arith.addf %14, %13 : vector<16x256xf32>
    %16 = arith.divf %14, %15 : vector<16x256xf32>
    %17 = arith.mulf %11, %16 : vector<16x256xf32>
    %18 = arith.mulf %17, %8 : vector<16x256xf32>
    %19 = arith.truncf %18 : vector<16x256xf32> to vector<16x256xbf16>
    %c0_11 = arith.constant 0 : index
    %c0_12 = arith.constant 0 : index
    %20 = vector.load %arg4[%c0_11, %c0_12] : memref<256x256xbf16, #tpu.memory_space<vmem>>, vector<256x256xbf16>
    %cst_13 = arith.constant dense<0.000000e+00> : vector<16x256xf32>
    %21 = tpu.matmul %19, %20, %cst_13 {dimension_numbers = #tpu.dot_dimension_numbers<[1], [0], [0], [1], [0, 0, 1, 1], [], []>} : vector<16x256xbf16>, vector<256x256xbf16>, vector<16x256xf32> -> vector<16x256xf32>
    %c0_14 = arith.constant 0 : index
    %c0_15 = arith.constant 0 : index
    %22 = vector.load %arg7[%c0_14, %c0_15] : memref<16x256xf32, #tpu.memory_space<vmem>>, vector<16x256xf32>
    tpu.vector_store %arg7[%c0_14, %c0_15], %21 {strides = array<i32>} : memref<16x256xf32, #tpu.memory_space<vmem>>, vector<16x256xf32>,
    return
  }
  func.func @transform_0(%arg0: i32) -> (i32, i32) {
    %c0_i32 = arith.constant 0 : i32
    %c0_i32_0 = arith.constant 0 : i32
    return %arg0, %c0_i32 : i32, i32
  }
  func.func @transform_1(%arg0: i32) -> (i32, i32) {
    %c0_i32 = arith.constant 0 : i32
    %c0_i32_0 = arith.constant 0 : i32
    %c0_i32_1 = arith.constant 0 : i32
    return %c0_i32, %c0_i32_0 : i32, i32
  }
  func.func @transform_2(%arg0: i32) -> (i32, i32) {
    %c0_i32 = arith.constant 0 : i32
    %c0_i32_0 = arith.constant 0 : i32
    %c0_i32_1 = arith.constant 0 : i32
    return %c0_i32, %c0_i32_0 : i32, i32
  }
  func.func @transform_3(%arg0: i32) -> (i32, i32) {
    %c0_i32 = arith.constant 0 : i32
    %c0_i32_0 = arith.constant 0 : i32
    %c0_i32_1 = arith.constant 0 : i32
    return %c0_i32, %c0_i32_0 : i32, i32
  }
  func.func @transform_4(%arg0: i32) -> (i32, i32) {
    %c0_i32 = arith.constant 0 : i32
    %c0_i32_0 = arith.constant 0 : i32
    %c0_i32_1 = arith.constant 0 : i32
    return %c0_i32, %c0_i32_0 : i32, i32
  }
  func.func @transform_5(%arg0: i32) -> (i32, i32) {
    %c0_i32 = arith.constant 0 : i32
    %c0_i32_0 = arith.constant 0 : i32
    %c0_i32_1 = arith.constant 0 : i32
    return %c0_i32, %c0_i32_0 : i32, i32
  }
  func.func @transform_6(%arg0: i32) -> (i32, i32) {
    %c0_i32 = arith.constant 0 : i32
    %c0_i32_0 = arith.constant 0 : i32
    return %arg0, %c0_i32 : i32, i32
  }
}

module attributes {stable_mosaic.version = 11 : i64} {
  func.func @_ff_kernel_resident(%arg0: i32, %arg1: memref<16x256xf32, #tpu.memory_space<vmem>>, %arg2: memref<256x256xbf16, #tpu.memory_space<vmem>>, %arg3: memref<256x256xbf16, #tpu.memory_space<vmem>>, %arg4: memref<256x256xbf16, #tpu.memory_space<vmem>>, %arg5: memref<1x256xf32, #tpu.memory_space<vmem>>, %arg6: memref<1x256xf32, #tpu.memory_space<vmem>>, %arg7: memref<16x256xf32, #tpu.memory_space<vmem>>) attributes {dimension_semantics = [#tpu.dimension_semantics<parallel>], iteration_bounds = array<i64: 1>, scalar_prefetch = 0 : i64, scratch_operands = 0 : i64, tpu.core_type = #tpu.core_type<tc>, window_params = [{transform_indices = @transform_0, window_bounds = array<i64: 16, 256>}, {pipeline_mode = #tpu.pipeline_mode<synchronous>, transform_indices = @transform_1, window_bounds = array<i64: 256, 256>}, {pipeline_mode = #tpu.pipeline_mode<synchronous>, transform_indices = @transform_2, window_bounds = array<i64: 256, 256>}, {pipeline_mode = #tpu.pipeline_mode<synchronous>, transform_indices = @transform_3, window_bounds = array<i64: 256, 256>}, {pipeline_mode = #tpu.pipeline_mode<synchronous>, transform_indices = @transform_4, window_bounds = array<i64: 1, 256>}, {pipeline_mode = #tpu.pipeline_mode<synchronous>, transform_indices = @transform_5, window_bounds = array<i64: 1, 256>}, {transform_indices = @transform_6, window_bounds = array<i64: 16, 256>}]} {
    %c0 = arith.constant 0 : index
    %c0_0 = arith.constant 0 : index
    %0 = vector.load %arg1[%c0, %c0_0] : memref<16x256xf32, #tpu.memory_space<vmem>>, vector<16x256xf32>
    %1 = arith.truncf %0 : vector<16x256xf32> to vector<16x256xbf16>
    %c0_1 = arith.constant 0 : index
    %c0_2 = arith.constant 0 : index
    %2 = vector.load %arg2[%c0_1, %c0_2] : memref<256x256xbf16, #tpu.memory_space<vmem>>, vector<256x256xbf16>
    %cst = arith.constant dense<0.000000e+00> : vector<16x256xf32>
    %3 = tpu.matmul %1, %2, %cst {dimension_numbers = #tpu.dot_dimension_numbers<[1], [0], [0], [1], [0, 0, 1, 1], [], []>} : vector<16x256xbf16>, vector<256x256xbf16>, vector<16x256xf32> -> vector<16x256xf32>
    %c0_3 = arith.constant 0 : index
    %c0_4 = arith.constant 0 : index
    %4 = vector.load %arg3[%c0_3, %c0_4] : memref<256x256xbf16, #tpu.memory_space<vmem>>, vector<256x256xbf16>
    %cst_5 = arith.constant dense<0.000000e+00> : vector<16x256xf32>
    %5 = tpu.matmul %1, %4, %cst_5 {dimension_numbers = #tpu.dot_dimension_numbers<[1], [0], [0], [1], [0, 0, 1, 1], [], []>} : vector<16x256xbf16>, vector<256x256xbf16>, vector<16x256xf32> -> vector<16x256xf32>
    %c0_6 = arith.constant 0 : index
    %c0_7 = arith.constant 0 : index
    %6 = vector.load %arg5[%c0_6, %c0_7] : memref<1x256xf32, #tpu.memory_space<vmem>>, vector<1x256xf32>
    %7 = vector.broadcast %6 : vector<1x256xf32> to vector<16x256xf32>
    %8 = arith.mulf %3, %7 : vector<16x256xf32>
    %c0_8 = arith.constant 0 : index
    %c0_9 = arith.constant 0 : index
    %9 = vector.load %arg6[%c0_8, %c0_9] : memref<1x256xf32, #tpu.memory_space<vmem>>, vector<1x256xf32>
    %10 = vector.broadcast %9 : vector<1x256xf32> to vector<16x256xf32>
    %11 = arith.mulf %5, %10 : vector<16x256xf32>
    %12 = arith.negf %11 : vector<16x256xf32>
    %13 = math.exp %12 : vector<16x256xf32>
    %cst_10 = arith.constant 1.000000e+00 : f32
    %14 = vector.broadcast %cst_10 : f32 to vector<16x256xf32>
    %15 = arith.addf %14, %13 : vector<16x256xf32>
    %16 = arith.divf %14, %15 : vector<16x256xf32>
    %17 = arith.mulf %11, %16 : vector<16x256xf32>
    %18 = arith.mulf %17, %8 : vector<16x256xf32>
    %19 = arith.truncf %18 : vector<16x256xf32> to vector<16x256xbf16>
    %c0_11 = arith.constant 0 : index
    %c0_12 = arith.constant 0 : index
    %20 = vector.load %arg4[%c0_11, %c0_12] : memref<256x256xbf16, #tpu.memory_space<vmem>>, vector<256x256xbf16>
    %cst_13 = arith.constant dense<0.000000e+00> : vector<16x256xf32>
    %21 = tpu.matmul %19, %20, %cst_13 {dimension_numbers = #tpu.dot_dimension_numbers<[1], [0], [0], [1], [0, 0, 1, 1], [], []>} : vector<16x256xbf16>, vector<256x256xbf16>, vector<16x256xf32> -> vector<16x256xf32>
    %c0_14 = arith.constant 0 : index
    %c0_15 = arith.constant 0 : index
    %22 = vector.load %arg7[%c0_14, %c0_15] : memref<16x256xf32, #tpu.memory_space<vmem>>, vector<16x256xf32>
    tpu.vector_store %arg7[%c0_14, %c0_15], %21 {strides = array<i32>} : memref<16x256xf32, #tpu.memory_space<vmem>>, vector<16x256xf32>,
    return
  }
  func.func @transform_0(%arg0: i32) -> (i32, i32) {
    %c0_i32 = arith.constant 0 : i32
    %c0_i32_0 = arith.constant 0 : i32
    return %arg0, %c0_i32 : i32, i32
  }
  func.func @transform_1(%arg0: i32) -> (i32, i32) {
    %c0_i32 = arith.constant 0 : i32
    %c0_i32_0 = arith.constant 0 : i32
    %c0_i32_1 = arith.constant 0 : i32
    return %c0_i32, %c0_i32_0 : i32, i32
  }
  func.func @transform_2(%arg0: i32) -> (i32, i32) {
    %c0_i32 = arith.constant 0 : i32
    %c0_i32_0 = arith.constant 0 : i32
    %c0_i32_1 = arith.constant 0 : i32
    return %c0_i32, %c0_i32_0 : i32, i32
  }
  func.func @transform_3(%arg0: i32) -> (i32, i32) {
    %c0_i32 = arith.constant 0 : i32
    %c0_i32_0 = arith.constant 0 : i32
    %c0_i32_1 = arith.constant 0 : i32
    return %c0_i32, %c0_i32_0 : i32, i32
  }
  func.func @transform_4(%arg0: i32) -> (i32, i32) {
    %c0_i32 = arith.constant 0 : i32
    %c0_i32_0 = arith.constant 0 : i32
    %c0_i32_1 = arith.constant 0 : i32
    return %c0_i32, %c0_i32_0 : i32, i32
  }
  func.func @transform_5(%arg0: i32) -> (i32, i32) {
    %c0_i32 = arith.constant 0 : i32
    %c0_i32_0 = arith.constant 0 : i32
    %c0_i32_1 = arith.constant 0 : i32
    return %c0_i32, %c0_i32_0 : i32, i32
  }
  func.func @transform_6(%arg0: i32) -> (i32, i32) {
    %c0_i32 = arith.constant 0 : i32
    %c0_i32_0 = arith.constant 0 : i32
    return %arg0, %c0_i32 : i32, i32
  }
}

</mosaic_0001>

<llo_original>
// kernel: tpu_custom_call.1
$region0: #{tpu_custom_call.1}
  #allocation0 [shape = 'u32[]', space=smem, size = 0x4, offset = 0x4, fixed_abs, tag = 'smem constant byte address 0x4 - core index']
  #allocation1 [shape = 'u32[72,128]{1,0:T(1,128)}', space=vmem, size = 0x9000, scoped, tag = 'internal scratch']
  %s0 = inlined_call_operand.hbm [shape: f32[16,256], index: 0, kind: input, shape index: {}]
  %s1 = inlined_call_operand.hbm [shape: bf16[256,256], index: 1, kind: input, shape index: {}]
  %s2 = inlined_call_operand.hbm [shape: bf16[256,256], index: 2, kind: input, shape index: {}]
  %s3 = inlined_call_operand.hbm [shape: bf16[256,256], index: 3, kind: input, shape index: {}]
  %s4 = inlined_call_operand.vmem [shape: f32[1,256], index: 4, kind: input, shape index: {}]
  %s5 = inlined_call_operand.vmem [shape: f32[1,256], index: 5, kind: input, shape index: {}]
  %s6 = inlined_call_operand.hbm [shape: f32[16,256], index: 6, kind: output, shape index: {}]
  %s7 = sld [smem:[#allocation0]]
  $region50: #{tpu_custom_call.1} parent=0
    _
  %s9 = ssub.s32 1, %s7
  %s10 = scalar_select 0, %s9, %s7
  $region1: #{tpu_custom_call.1} parent=0
    #allocation2 [shape = 'u8[16384]{0}', space=vmem, size = 0x4000, scoped, tag = 'input window, operand 0, single buffered']
    #allocation3 [shape = 's32[1]{0}', space=sflag, size = 0x4, scoped, tag = 'scoped memory for tpu_custom_call.1']
    #allocation4 [shape = 's32[1]{0}', space=sflag, size = 0x4, scoped, tag = 'scoped memory for tpu_custom_call.1']
    #allocation5 [shape = 'u8[131072]{0}', space=vmem, size = 0x20000, scoped, tag = 'input window, operand 1, single buffered']
    #allocation6 [shape = 's32[1]{0}', space=sflag, size = 0x4, scoped, tag = 'scoped memory for tpu_custom_call.1']
    #allocation7 [shape = 'u8[131072]{0}', space=vmem, size = 0x20000, scoped, tag = 'input window, operand 2, single buffered']
    #allocation8 [shape = 'u8[131072]{0}', space=vmem, size = 0x20000, scoped, tag = 'input window, operand 3, single buffered']
    #allocation9 [shape = 's32[1]{0}', space=sflag, size = 0x4, scoped, tag = 'scoped memory for tpu_custom_call.1']
    #allocation10 [shape = 'u8[16384]{0}', space=vmem, size = 0x4000, scoped, tag = 'output window, operand 0, single buffered']
    %11 = vsyncpa [#allocation3], 0
    %12 = vsyncpa [#allocation6], 0
    %13 = vsyncpa [#allocation9], 0
    %14 = vsyncpa [#allocation4], 0
    // Predicated region
    $region2: #{tpu_custom_call.1} parent=1 // pred_check
      _
    $region3: #{tpu_custom_call.1} parent=1 // pred_check_branch
      %16 = sbr.rel (0) target = $region5
    $region4: #{tpu_custom_call.1} parent=1 // pred_region
      %18 = vsyncadd [#allocation3], 0
      %s19 = sshll.u32 %s0, 4
      %s20 = int_to_ptr.hbm [resolvable:$true] %s19
      %s21 = sshll.u32 [#allocation2], 4
      %s22 = int_to_ptr.vmem [resolvable:$true] %s21
      %27 = dma.hbm_to_vmem [thread:$0]  %s20, 512, %s22, [#allocation3], 256, 256, 16
    $region5: #{tpu_custom_call.1} parent=1 // pred_fallthru
      _
    // Predicated region
    $region6: #{tpu_custom_call.1} parent=1 // pred_check
      _
    $region7: #{tpu_custom_call.1} parent=1 // pred_check_branch
      %29 = sbr.rel (0) target = $region9
    $region8: #{tpu_custom_call.1} parent=1 // pred_region
      %31 = vsyncadd [#allocation6], 0
      %s32 = sshll.u32 %s1, 4
      %s33 = int_to_ptr.hbm [resolvable:$true] %s32
      %s34 = sshll.u32 [#allocation5], 4
      %s35 = int_to_ptr.vmem [resolvable:$true] %s34
      %40 = dma.hbm_to_vmem [thread:$0]  %s33, 4096, %s35, [#allocation6], 128, 128, 8
    $region9: #{tpu_custom_call.1} parent=1 // pred_fallthru
      _
    // Predicated region
    $region10: #{tpu_custom_call.1} parent=1 // pred_check
      _
    $region11: #{tpu_custom_call.1} parent=1 // pred_check_branch
      %42 = sbr.rel (0) target = $region13
    $region12: #{tpu_custom_call.1} parent=1 // pred_region
      %44 = vsyncadd [#allocation6], 0
      %s45 = sshll.u32 %s2, 4
      %s46 = int_to_ptr.hbm [resolvable:$true] %s45
      %s47 = sshll.u32 [#allocation7], 4
      %s48 = int_to_ptr.vmem [resolvable:$true] %s47
      %53 = dma.hbm_to_vmem [thread:$0]  %s46, 4096, %s48, [#allocation6], 128, 128, 8
    $region13: #{tpu_custom_call.1} parent=1 // pred_fallthru
      _
    // Predicated region
    $region14: #{tpu_custom_call.1} parent=1 // pred_check
      _
    $region15: #{tpu_custom_call.1} parent=1 // pred_check_branch
      %55 = sbr.rel (0) target = $region17
    $region16: #{tpu_custom_call.1} parent=1 // pred_region
      %57 = vsyncadd [#allocation9], 0
      %s58 = sshll.u32 %s3, 4
      %s59 = int_to_ptr.hbm [resolvable:$true] %s58
      %s60 = sshll.u32 [#allocation8], 4
      %s61 = int_to_ptr.vmem [resolvable:$true] %s60
      %66 = dma.hbm_to_vmem [thread:$0]  %s59, 4096, %s61, [#allocation9], 128, 128, 8
    $region17: #{tpu_custom_call.1} parent=1 // pred_fallthru
      _
    // Predicated region
    $region18: #{tpu_custom_call.1} parent=1 // pred_check
      _
    $region19: #{tpu_custom_call.1} parent=1 // pred_check_branch
      %68 = sbr.rel (0) target = $region21
    $region20: #{tpu_custom_call.1} parent=1 // pred_region
      _
    $region21: #{tpu_custom_call.1} parent=1 // pred_fallthru
      _
    // Predicated region
    $region22: #{tpu_custom_call.1} parent=1 // pred_check
      _
    $region23: #{tpu_custom_call.1} parent=1 // pred_check_branch
      %70 = sbr.rel (0) target = $region25
    $region24: #{tpu_custom_call.1} parent=1 // pred_region
      _
    $region25: #{tpu_custom_call.1} parent=1 // pred_fallthru
      _
    // Predicated region
    $region26: #{tpu_custom_call.1} parent=1 // pred_check
      _
    $region27: #{tpu_custom_call.1} parent=1 // pred_check_branch
      %72 = sbr.rel (0) target = $region29
    $region28: #{tpu_custom_call.1} parent=1 // pred_region
      %74 = dma.done [#allocation3], 512
    $region29: #{tpu_custom_call.1} parent=1 // pred_fallthru
      _
    // Predicated region
    $region30: #{tpu_custom_call.1} parent=1 // pred_check
      _
    $region31: #{tpu_custom_call.1} parent=1 // pred_check_branch
      %76 = sbr.rel (0) target = $region33
    $region32: #{tpu_custom_call.1} parent=1 // pred_region
      %78 = dma.done [#allocation6], 4096
    $region33: #{tpu_custom_call.1} parent=1 // pred_fallthru
      _
    // Predicated region
    $region34: #{tpu_custom_call.1} parent=1 // pred_check
      _
    $region35: #{tpu_custom_call.1} parent=1 // pred_check_branch
      %80 = sbr.rel (0) target = $region37
    $region36: #{tpu_custom_call.1} parent=1 // pred_region
      %82 = dma.done [#allocation6], 4096
    $region37: #{tpu_custom_call.1} parent=1 // pred_fallthru
      _
    // Predicated region
    $region38: #{tpu_custom_call.1} parent=1 // pred_check
      _
    $region39: #{tpu_custom_call.1} parent=1 // pred_check_branch
      %84 = sbr.rel (0) target = $region41
    $region40: #{tpu_custom_call.1} parent=1 // pred_region
      %86 = dma.done [#allocation9], 4096
    $region41: #{tpu_custom_call.1} parent=1 // pred_fallthru
      _
    %v87 = vld [vmem:[#allocation2] sm:$0xff]
    %v88 = vld [vmem:[#allocation2 + $0x8] sm:$0xff]
    %v89 = vld [vmem:[#allocation2 + $0x10] sm:$0xff]
    %v90 = vld [vmem:[#allocation2 + $0x18] sm:$0xff]
    %v91 = vpack.c.bf16 %v89, %v87
    %v92 = vpack.c.bf16 %v90, %v88
    %v93 = vld [vmem:[#allocation5] sm:$0xff]
    %v94 = vld [vmem:[#allocation5 + $0x8] sm:$0xff]
    %v95 = vld [vmem:[#allocation5 + $0x10] sm:$0xff]
    %v96 = vld [vmem:[#allocation5 + $0x18] sm:$0xff]
    %v97 = vld [vmem:[#allocation5 + $0x20] sm:$0xff]
    %v98 = vld [vmem:[#allocation5 + $0x28] sm:$0xff]
    %v99 = vld [vmem:[#allocation5 + $0x30] sm:$0xff]
    %v100 = vld [vmem:[#allocation5 + $0x38] sm:$0xff]
    %v101 = vld [vmem:[#allocation5 + $0x40] sm:$0xff]
    %v102 = vld [vmem:[#allocation5 + $0x48] sm:$0xff]
    %v103 = vld [vmem:[#allocation5 + $0x50] sm:$0xff]
    %v104 = vld [vmem:[#allocation5 + $0x58] sm:$0xff]
    %v105 = vld [vmem:[#allocation5 + $0x60] sm:$0xff]
    %v106 = vld [vmem:[#allocation5 + $0x68] sm:$0xff]
    %v107 = vld [vmem:[#allocation5 + $0x70] sm:$0xff]
    %v108 = vld [vmem:[#allocation5 + $0x78] sm:$0xff]
    %v109 = vld [vmem:[#allocation5 + $0x80] sm:$0xff]
    %v110 = vld [vmem:[#allocation5 + $0x88] sm:$0xff]
    %v111 = vld [vmem:[#allocation5 + $0x90] sm:$0xff]
    %v112 = vld [vmem:[#allocation5 + $0x98] sm:$0xff]
    %v113 = vld [vmem:[#allocation5 + $0xa0] sm:$0xff]
    %v114 = vld [vmem:[#allocation5 + $0xa8] sm:$0xff]
    %v115 = vld [vmem:[#allocation5 + $0xb0] sm:$0xff]
    %v116 = vld [vmem:[#allocation5 + $0xb8] sm:$0xff]
    %v117 = vld [vmem:[#allocation5 + $0xc0] sm:$0xff]
    %v118 = vld [vmem:[#allocation5 + $0xc8] sm:$0xff]
    %v119 = vld [vmem:[#allocation5 + $0xd0] sm:$0xff]
    %v120 = vld [vmem:[#allocation5 + $0xd8] sm:$0xff]
    %v121 = vld [vmem:[#allocation5 + $0xe0] sm:$0xff]
    %v122 = vld [vmem:[#allocation5 + $0xe8] sm:$0xff]
    %v123 = vld [vmem:[#allocation5 + $0xf0] sm:$0xff]
    %v124 = vld [vmem:[#allocation5 + $0xf8] sm:$0xff]
    %v157 = vunpack.c.l.b16 %v93
    %v158 = vunpack.c.h.b16 %v93
    %v159 = vunpack.c.l.b16 %v94
    %v160 = vunpack.c.h.b16 %v94
    %v161 = vunpack.c.l.b16 %v95
    %v162 = vunpack.c.h.b16 %v95
    %v163 = vunpack.c.l.b16 %v96
    %v164 = vunpack.c.h.b16 %v96
    %v165 = vunpack.c.l.b16 %v97
    %v166 = vunpack.c.h.b16 %v97
    %v167 = vunpack.c.l.b16 %v98
    %v168 = vunpack.c.h.b16 %v98
    %v169 = vunpack.c.l.b16 %v99
    %v170 = vunpack.c.h.b16 %v99
    %v171 = vunpack.c.l.b16 %v100
    %v172 = vunpack.c.h.b16 %v100
    %v173 = vunpack.c.l.b16 %v101
    %v174 = vunpack.c.h.b16 %v101
    %v175 = vunpack.c.l.b16 %v102
    %v176 = vunpack.c.h.b16 %v102
    %v177 = vunpack.c.l.b16 %v103
    %v178 = vunpack.c.h.b16 %v103
    %v179 = vunpack.c.l.b16 %v104
    %v180 = vunpack.c.h.b16 %v104
    %v181 = vunpack.c.l.b16 %v105
    %v182 = vunpack.c.h.b16 %v105
    %v183 = vunpack.c.l.b16 %v106
    %v184 = vunpack.c.h.b16 %v106
    %v185 = vunpack.c.l.b16 %v107
    %v186 = vunpack.c.h.b16 %v107
    %v187 = vunpack.c.l.b16 %v108
    %v188 = vunpack.c.h.b16 %v108
    %v189 = vunpack.c.l.b16 %v109
    %v190 = vunpack.c.h.b16 %v109
    %v191 = vunpack.c.l.b16 %v110
    %v192 = vunpack.c.h.b16 %v110
    %v193 = vunpack.c.l.b16 %v111
    %v194 = vunpack.c.h.b16 %v111
    %v195 = vunpack.c.l.b16 %v112
    %v196 = vunpack.c.h.b16 %v112
    %v197 = vunpack.c.l.b16 %v113
    %v198 = vunpack.c.h.b16 %v113
    %v199 = vunpack.c.l.b16 %v114
    %v200 = vunpack.c.h.b16 %v114
    %v201 = vunpack.c.l.b16 %v115
    %v202 = vunpack.c.h.b16 %v115
    %v203 = vunpack.c.l.b16 %v116
    %v204 = vunpack.c.h.b16 %v116
    %v205 = vunpack.c.l.b16 %v117
    %v206 = vunpack.c.h.b16 %v117
    %v207 = vunpack.c.l.b16 %v118
    %v208 = vunpack.c.h.b16 %v118
    %v209 = vunpack.c.l.b16 %v119
    %v210 = vunpack.c.h.b16 %v119
    %v211 = vunpack.c.l.b16 %v120
    %v212 = vunpack.c.h.b16 %v120
    %v213 = vunpack.c.l.b16 %v121
    %v214 = vunpack.c.h.b16 %v121
    %v215 = vunpack.c.l.b16 %v122
    %v216 = vunpack.c.h.b16 %v122
    %v217 = vunpack.c.l.b16 %v123
    %v218 = vunpack.c.h.b16 %v123
    %v219 = vunpack.c.l.b16 %v124
    %v220 = vunpack.c.h.b16 %v124
    %v221 = vpack.c.b16 %v159, %v157
    %v222 = vpack.c.b16 %v160, %v158
    %v223 = vpack.c.b16 %v163, %v161
    %v224 = vpack.c.b16 %v164, %v162
    %v225 = vpack.c.b16 %v167, %v165
    %v226 = vpack.c.b16 %v168, %v166
    %v227 = vpack.c.b16 %v171, %v169
    %v228 = vpack.c.b16 %v172, %v170
    %v229 = vpack.c.b16 %v175, %v173
    %v230 = vpack.c.b16 %v176, %v174
    %v231 = vpack.c.b16 %v179, %v177
    %v232 = vpack.c.b16 %v180, %v178
    %v233 = vpack.c.b16 %v183, %v181
    %v234 = vpack.c.b16 %v184, %v182
    %v235 = vpack.c.b16 %v187, %v185
    %v236 = vpack.c.b16 %v188, %v186
    %v237 = vpack.c.b16 %v191, %v189
    %v238 = vpack.c.b16 %v192, %v190
    %v239 = vpack.c.b16 %v195, %v193
    %v240 = vpack.c.b16 %v196, %v194
    %v241 = vpack.c.b16 %v199, %v197
    %v242 = vpack.c.b16 %v200, %v198
    %v243 = vpack.c.b16 %v203, %v201
    %v244 = vpack.c.b16 %v204, %v202
    %v245 = vpack.c.b16 %v207, %v205
    %v246 = vpack.c.b16 %v208, %v206
    %v247 = vpack.c.b16 %v211, %v209
    %v248 = vpack.c.b16 %v212, %v210
    %v249 = vpack.c.b16 %v215, %v213
    %v250 = vpack.c.b16 %v216, %v214
    %v251 = vpack.c.b16 %v219, %v217
    %v252 = vpack.c.b16 %v220, %v218
    %285 = vmatpush.bf16.msra.mxu0 %v235
    %286 = vmatpush.bf16.msra.mxu0 %v233
    %287 = vmatpush.bf16.msra.mxu0 %v231
    %288 = vmatpush.bf16.msra.mxu0 %v229
    %289 = vmatpush.bf16.msra.mxu0 %v227
    %290 = vmatpush.bf16.msra.mxu0 %v225
    %291 = vmatpush.bf16.msra.mxu0 %v223
    %292 = vmatpush.bf16.msra.mxu0 %v221
    %293 = vmatmul.bf16.gmra.mxu0 %v91
    %v294 = vpop.f32.mrf.mxu0
    %v295 = vadd.f32 0.0, %v294
    %v296 = vpop.f32.mrf.mxu0
    %v297 = vadd.f32 0.0, %v296
    %298 = vdwg.mxu0
    %299 = vmatpush.bf16.msra.mxu0 %v251
    %300 = vmatpush.bf16.msra.mxu0 %v249
    %301 = vmatpush.bf16.msra.mxu0 %v247
    %302 = vmatpush.bf16.msra.mxu0 %v245
    %303 = vmatpush.bf16.msra.mxu0 %v243
    %304 = vmatpush.bf16.msra.mxu0 %v241
    %305 = vmatpush.bf16.msra.mxu0 %v239
    %306 = vmatpush.bf16.msra.mxu0 %v237
    %307 = vmatmul.bf16.gmra.mxu0 %v92
    %v308 = vpop.f32.mrf.mxu0
    %v309 = vadd.f32 %v295, %v308
    %v310 = vpop.f32.mrf.mxu0
    %v311 = vadd.f32 %v297, %v310
    %312 = vdwg.mxu0
    %313 = vmatpush.bf16.msra.mxu0 %v236
    %314 = vmatpush.bf16.msra.mxu0 %v234
    %315 = vmatpush.bf16.msra.mxu0 %v232
    %316 = vmatpush.bf16.msra.mxu0 %v230
    %317 = vmatpush.bf16.msra.mxu0 %v228
    %318 = vmatpush.bf16.msra.mxu0 %v226
    %319 = vmatpush.bf16.msra.mxu0 %v224
    %320 = vmatpush.bf16.msra.mxu0 %v222
    %321 = vmatmul.bf16.gmra.mxu0 %v91
    %v322 = vpop.f32.mrf.mxu0
    %v323 = vadd.f32 0.0, %v322
    %v324 = vpop.f32.mrf.mxu0
    %v325 = vadd.f32 0.0, %v324
    %326 = vdwg.mxu0
    %327 = vmatpush.bf16.msra.mxu0 %v252
    %328 = vmatpush.bf16.msra.mxu0 %v250
    %329 = vmatpush.bf16.msra.mxu0 %v248
    %330 = vmatpush.bf16.msra.mxu0 %v246
    %331 = vmatpush.bf16.msra.mxu0 %v244
    %332 = vmatpush.bf16.msra.mxu0 %v242
    %333 = vmatpush.bf16.msra.mxu0 %v240
    %334 = vmatpush.bf16.msra.mxu0 %v238
    %335 = vmatmul.bf16.gmra.mxu0 %v92
    %v336 = vpop.f32.mrf.mxu0
    %v337 = vadd.f32 %v323, %v336
    %v338 = vpop.f32.mrf.mxu0
    %v339 = vadd.f32 %v325, %v338
    %340 = vdwg.mxu0
    %v341 = vld [vmem:[#allocation7] sm:$0xff]
    %v342 = vld [vmem:[#allocation7 + $0x8] sm:$0xff]
    %v343 = vld [vmem:[#allocation7 + $0x10] sm:$0xff]
    %v344 = vld [vmem:[#allocation7 + $0x18] sm:$0xff]
    %v345 = vld [vmem:[#allocation7 + $0x20] sm:$0xff]
    %v346 = vld [vmem:[#allocation7 + $0x28] sm:$0xff]
    %v347 = vld [vmem:[#allocation7 + $0x30] sm:$0xff]
    %v348 = vld [vmem:[#allocation7 + $0x38] sm:$0xff]
    %v349 = vld [vmem:[#allocation7 + $0x40] sm:$0xff]
    %v350 = vld [vmem:[#allocation7 + $0x48] sm:$0xff]
    %v351 = vld [vmem:[#allocation7 + $0x50] sm:$0xff]
    %v352 = vld [vmem:[#allocation7 + $0x58] sm:$0xff]
    %v353 = vld [vmem:[#allocation7 + $0x60] sm:$0xff]
    %v354 = vld [vmem:[#allocation7 + $0x68] sm:$0xff]
    %v355 = vld [vmem:[#allocation7 + $0x70] sm:$0xff]
    %v356 = vld [vmem:[#allocation7 + $0x78] sm:$0xff]
    %v357 = vld [vmem:[#allocation7 + $0x80] sm:$0xff]
    %v358 = vld [vmem:[#allocation7 + $0x88] sm:$0xff]
    %v359 = vld [vmem:[#allocation7 + $0x90] sm:$0xff]
    %v360 = vld [vmem:[#allocation7 + $0x98] sm:$0xff]
    %v361 = vld [vmem:[#allocation7 + $0xa0] sm:$0xff]
    %v362 = vld [vmem:[#allocation7 + $0xa8] sm:$0xff]
    %v363 = vld [vmem:[#allocation7 + $0xb0] sm:$0xff]
    %v364 = vld [vmem:[#allocation7 + $0xb8] sm:$0xff]
    %v365 = vld [vmem:[#allocation7 + $0xc0] sm:$0xff]
    %v366 = vld [vmem:[#allocation7 + $0xc8] sm:$0xff]
    %v367 = vld [vmem:[#allocation7 + $0xd0] sm:$0xff]
    %v368 = vld [vmem:[#allocation7 + $0xd8] sm:$0xff]
    %v369 = vld [vmem:[#allocation7 + $0xe0] sm:$0xff]
    %v370 = vld [vmem:[#allocation7 + $0xe8] sm:$0xff]
    %v371 = vld [vmem:[#allocation7 + $0xf0] sm:$0xff]
    %v372 = vld [vmem:[#allocation7 + $0xf8] sm:$0xff]
    %v405 = vunpack.c.l.b16 %v341
    %v406 = vunpack.c.h.b16 %v341
    %v407 = vunpack.c.l.b16 %v342
    %v408 = vunpack.c.h.b16 %v342
    %v409 = vunpack.c.l.b16 %v343
    %v410 = vunpack.c.h.b16 %v343
    %v411 = vunpack.c.l.b16 %v344
    %v412 = vunpack.c.h.b16 %v344
    %v413 = vunpack.c.l.b16 %v345
    %v414 = vunpack.c.h.b16 %v345
    %v415 = vunpack.c.l.b16 %v346
    %v416 = vunpack.c.h.b16 %v346
    %v417 = vunpack.c.l.b16 %v347
    %v418 = vunpack.c.h.b16 %v347
    %v419 = vunpack.c.l.b16 %v348
    %v420 = vunpack.c.h.b16 %v348
    %v421 = vunpack.c.l.b16 %v349
    %v422 = vunpack.c.h.b16 %v349
    %v423 = vunpack.c.l.b16 %v350
    %v424 = vunpack.c.h.b16 %v350
    %v425 = vunpack.c.l.b16 %v351
    %v426 = vunpack.c.h.b16 %v351
    %v427 = vunpack.c.l.b16 %v352
    %v428 = vunpack.c.h.b16 %v352
    %v429 = vunpack.c.l.b16 %v353
    %v430 = vunpack.c.h.b16 %v353
    %v431 = vunpack.c.l.b16 %v354
    %v432 = vunpack.c.h.b16 %v354
    %v433 = vunpack.c.l.b16 %v355
    %v434 = vunpack.c.h.b16 %v355
    %v435 = vunpack.c.l.b16 %v356
    %v436 = vunpack.c.h.b16 %v356
    %v437 = vunpack.c.l.b16 %v357
    %v438 = vunpack.c.h.b16 %v357
    %v439 = vunpack.c.l.b16 %v358
    %v440 = vunpack.c.h.b16 %v358
    %v441 = vunpack.c.l.b16 %v359
    %v442 = vunpack.c.h.b16 %v359
    %v443 = vunpack.c.l.b16 %v360
    %v444 = vunpack.c.h.b16 %v360
    %v445 = vunpack.c.l.b16 %v361
    %v446 = vunpack.c.h.b16 %v361
    %v447 = vunpack.c.l.b16 %v362
    %v448 = vunpack.c.h.b16 %v362
    %v449 = vunpack.c.l.b16 %v363
    %v450 = vunpack.c.h.b16 %v363
    %v451 = vunpack.c.l.b16 %v364
    %v452 = vunpack.c.h.b16 %v364
    %v453 = vunpack.c.l.b16 %v365
    %v454 = vunpack.c.h.b16 %v365
    %v455 = vunpack.c.l.b16 %v366
    %v456 = vunpack.c.h.b16 %v366
    %v457 = vunpack.c.l.b16 %v367
    %v458 = vunpack.c.h.b16 %v367
    %v459 = vunpack.c.l.b16 %v368
    %v460 = vunpack.c.h.b16 %v368
    %v461 = vunpack.c.l.b16 %v369
    %v462 = vunpack.c.h.b16 %v369
    %v463 = vunpack.c.l.b16 %v370
    %v464 = vunpack.c.h.b16 %v370
    %v465 = vunpack.c.l.b16 %v371
    %v466 = vunpack.c.h.b16 %v371
    %v467 = vunpack.c.l.b16 %v372
    %v468 = vunpack.c.h.b16 %v372
    %v469 = vpack.c.b16 %v407, %v405
    %v470 = vpack.c.b16 %v408, %v406
    %v471 = vpack.c.b16 %v411, %v409
    %v472 = vpack.c.b16 %v412, %v410
    %v473 = vpack.c.b16 %v415, %v413
    %v474 = vpack.c.b16 %v416, %v414
    %v475 = vpack.c.b16 %v419, %v417
    %v476 = vpack.c.b16 %v420, %v418
    %v477 = vpack.c.b16 %v423, %v421
    %v478 = vpack.c.b16 %v424, %v422
    %v479 = vpack.c.b16 %v427, %v425
    %v480 = vpack.c.b16 %v428, %v426
    %v481 = vpack.c.b16 %v431, %v429
    %v482 = vpack.c.b16 %v432, %v430
    %v483 = vpack.c.b16 %v435, %v433
    %v484 = vpack.c.b16 %v436, %v434
    %v485 = vpack.c.b16 %v439, %v437
    %v486 = vpack.c.b16 %v440, %v438
    %v487 = vpack.c.b16 %v443, %v441
    %v488 = vpack.c.b16 %v444, %v442
    %v489 = vpack.c.b16 %v447, %v445
    %v490 = vpack.c.b16 %v448, %v446
    %v491 = vpack.c.b16 %v451, %v449
    %v492 = vpack.c.b16 %v452, %v450
    %v493 = vpack.c.b16 %v455, %v453
    %v494 = vpack.c.b16 %v456, %v454
    %v495 = vpack.c.b16 %v459, %v457
    %v496 = vpack.c.b16 %v460, %v458
    %v497 = vpack.c.b16 %v463, %v461
    %v498 = vpack.c.b16 %v464, %v462
    %v499 = vpack.c.b16 %v467, %v465
    %v500 = vpack.c.b16 %v468, %v466
    %533 = vmatpush.bf16.msra.mxu0 %v483
    %534 = vmatpush.bf16.msra.mxu0 %v481
    %535 = vmatpush.bf16.msra.mxu0 %v479
    %536 = vmatpush.bf16.msra.mxu0 %v477
    %537 = vmatpush.bf16.msra.mxu0 %v475
    %538 = vmatpush.bf16.msra.mxu0 %v473
    %539 = vmatpush.bf16.msra.mxu0 %v471
    %540 = vmatpush.bf16.msra.mxu0 %v469
    %541 = vmatmul.bf16.gmra.mxu0 %v91
    %v542 = vpop.f32.mrf.mxu0
    %v543 = vadd.f32 0.0, %v542
    %v544 = vpop.f32.mrf.mxu0
    %v545 = vadd.f32 0.0, %v544
    %546 = vdwg.mxu0
    %547 = vmatpush.bf16.msra.mxu0 %v499
    %548 = vmatpush.bf16.msra.mxu0 %v497
    %549 = vmatpush.bf16.msra.mxu0 %v495
    %550 = vmatpush.bf16.msra.mxu0 %v493
    %551 = vmatpush.bf16.msra.mxu0 %v491
    %552 = vmatpush.bf16.msra.mxu0 %v489
    %553 = vmatpush.bf16.msra.mxu0 %v487
    %554 = vmatpush.bf16.msra.mxu0 %v485
    %555 = vmatmul.bf16.gmra.mxu0 %v92
    %v556 = vpop.f32.mrf.mxu0
    %v557 = vadd.f32 %v543, %v556
    %v558 = vpop.f32.mrf.mxu0
    %v559 = vadd.f32 %v545, %v558
    %560 = vdwg.mxu0
    %561 = vmatpush.bf16.msra.mxu0 %v484
    %562 = vmatpush.bf16.msra.mxu0 %v482
    %563 = vmatpush.bf16.msra.mxu0 %v480
    %564 = vmatpush.bf16.msra.mxu0 %v478
    %565 = vmatpush.bf16.msra.mxu0 %v476
    %566 = vmatpush.bf16.msra.mxu0 %v474
    %567 = vmatpush.bf16.msra.mxu0 %v472
    %568 = vmatpush.bf16.msra.mxu0 %v470
    %569 = vmatmul.bf16.gmra.mxu0 %v91
    %v570 = vpop.f32.mrf.mxu0
    %v571 = vadd.f32 0.0, %v570
    %v572 = vpop.f32.mrf.mxu0
    %v573 = vadd.f32 0.0, %v572
    %574 = vdwg.mxu0
    %575 = vmatpush.bf16.msra.mxu0 %v500
    %576 = vmatpush.bf16.msra.mxu0 %v498
    %577 = vmatpush.bf16.msra.mxu0 %v496
    %578 = vmatpush.bf16.msra.mxu0 %v494
    %579 = vmatpush.bf16.msra.mxu0 %v492
    %580 = vmatpush.bf16.msra.mxu0 %v490
    %581 = vmatpush.bf16.msra.mxu0 %v488
    %582 = vmatpush.bf16.msra.mxu0 %v486
    %583 = vmatmul.bf16.gmra.mxu0 %v92
    %v584 = vpop.f32.mrf.mxu0
    %v585 = vadd.f32 %v571, %v584
    %v586 = vpop.f32.mrf.mxu0
    %v587 = vadd.f32 %v573, %v586
    %588 = vdwg.mxu0
    %v589 = vld [vmem:[%s4] sm:$0x3]
    %v591 = vperm.slane %v589, 0
    %v592 = vperm.slane %v589, 1
    %v595 = vmul.f32 %v309, %v591
    %v596 = vmul.f32 %v337, %v592
    %v597 = vmul.f32 %v311, %v591
    %v598 = vmul.f32 %v339, %v592
    %v599 = vld [vmem:[%s5] sm:$0x3]
    %v601 = vperm.slane %v599, 0
    %v602 = vperm.slane %v599, 1
    %v605 = vmul.f32 %v557, %v601
    %v606 = vmul.f32 %v585, %v602
    %v607 = vmul.f32 %v559, %v601
    %v608 = vmul.f32 %v587, %v602
    %v609 = vxor.u32 %v605, 2147483648
    %v610 = vxor.u32 %v606, 2147483648
    %v611 = vxor.u32 %v607, 2147483648
    %v612 = vxor.u32 %v608, 2147483648
    %v613 = vmul.f32 %v609, 1.442695
    %v614 = vpow.pop %v613
    %v615 = vmul.f32 %v610, 1.442695
    %v616 = vpow.pop %v615
    %v617 = vmul.f32 %v611, 1.442695
    %v618 = vpow.pop %v617
    %v619 = vmul.f32 %v612, 1.442695
    %v620 = vpow.pop %v619
    %v621 = vadd.f32 %v614, 1.0
    %v622 = vadd.f32 %v616, 1.0
    %v623 = vadd.f32 %v618, 1.0
    %v624 = vadd.f32 %v620, 1.0
    %v625 = vrcp.pop %v621
    %v626 = vmul.f32 %v621, %v625
    %v627 = vsub.f32 1.0, %v626
    %v628 = vmul.f32 %v625, %v627
    %v629 = vadd.f32 %v625, %v628
    %vm630 = vweird.f32 %v621
    %vm631 = vweird.f32 %v625
    %vm632 = vmor %vm630, %vm631
    %v633 = vsel %vm632, %v625, %v629
    %v634 = vand.u32 2147483647, %v621
    %vm635 = vcmp.eq.f32.partialorder %v634, 8.507059e+37
    %v636 = vand.u32 %v621, 2147483648
    %v637 = vor.u32 1.1754944e-38, %v636
    %v638 = vsel %vm635, %v637, %v633
    %v639 = vmul.f32 1.0, %v638
    %v640 = vrcp.pop %v622
    %v641 = vmul.f32 %v622, %v640
    %v642 = vsub.f32 1.0, %v641
    %v643 = vmul.f32 %v640, %v642
    %v644 = vadd.f32 %v640, %v643
    %vm645 = vweird.f32 %v622
    %vm646 = vweird.f32 %v640
    %vm647 = vmor %vm645, %vm646
    %v648 = vsel %vm647, %v640, %v644
    %v649 = vand.u32 2147483647, %v622
    %vm650 = vcmp.eq.f32.partialorder %v649, 8.507059e+37
    %v651 = vand.u32 %v622, 2147483648
    %v652 = vor.u32 1.1754944e-38, %v651
    %v653 = vsel %vm650, %v652, %v648
    %v654 = vmul.f32 1.0, %v653
    %v655 = vrcp.pop %v623
    %v656 = vmul.f32 %v623, %v655
    %v657 = vsub.f32 1.0, %v656
    %v658 = vmul.f32 %v655, %v657
    %v659 = vadd.f32 %v655, %v658
    %vm660 = vweird.f32 %v623
    %vm661 = vweird.f32 %v655
    %vm662 = vmor %vm660, %vm661
    %v663 = vsel %vm662, %v655, %v659
    %v664 = vand.u32 2147483647, %v623
    %vm665 = vcmp.eq.f32.partialorder %v664, 8.507059e+37
    %v666 = vand.u32 %v623, 2147483648
    %v667 = vor.u32 1.1754944e-38, %v666
    %v668 = vsel %vm665, %v667, %v663
    %v669 = vmul.f32 1.0, %v668
    %v670 = vrcp.pop %v624
    %v671 = vmul.f32 %v624, %v670
    %v672 = vsub.f32 1.0, %v671
    %v673 = vmul.f32 %v670, %v672
    %v674 = vadd.f32 %v670, %v673
    %vm675 = vweird.f32 %v624
    %vm676 = vweird.f32 %v670
    %vm677 = vmor %vm675, %vm676
    %v678 = vsel %vm677, %v670, %v674
    %v679 = vand.u32 2147483647, %v624
    %vm680 = vcmp.eq.f32.partialorder %v679, 8.507059e+37
    %v681 = vand.u32 %v624, 2147483648
    %v682 = vor.u32 1.1754944e-38, %v681
    %v683 = vsel %vm680, %v682, %v678
    %v684 = vmul.f32 1.0, %v683
    %v685 = vmul.f32 %v605, %v639
    %v686 = vmul.f32 %v606, %v654
    %v687 = vmul.f32 %v607, %v669
    %v688 = vmul.f32 %v608, %v684
    %v689 = vmul.f32 %v685, %v595
    %v690 = vmul.f32 %v686, %v596
    %v691 = vmul.f32 %v687, %v597
    %v692 = vmul.f32 %v688, %v598
    %v693 = vpack.c.bf16 %v691, %v689
    %v694 = vpack.c.bf16 %v692, %v690
    %v695 = vld [vmem:[#allocation8] sm:$0xff]
    %v696 = vld [vmem:[#allocation8 + $0x8] sm:$0xff]
    %v697 = vld [vmem:[#allocation8 + $0x10] sm:$0xff]
    %v698 = vld [vmem:[#allocation8 + $0x18] sm:$0xff]
    %v699 = vld [vmem:[#allocation8 + $0x20] sm:$0xff]
    %v700 = vld [vmem:[#allocation8 + $0x28] sm:$0xff]
    %v701 = vld [vmem:[#allocation8 + $0x30] sm:$0xff]
    %v702 = vld [vmem:[#allocation8 + $0x38] sm:$0xff]
    %v703 = vld [vmem:[#allocation8 + $0x40] sm:$0xff]
    %v704 = vld [vmem:[#allocation8 + $0x48] sm:$0xff]
    %v705 = vld [vmem:[#allocation8 + $0x50] sm:$0xff]
    %v706 = vld [vmem:[#allocation8 + $0x58] sm:$0xff]
    %v707 = vld [vmem:[#allocation8 + $0x60] sm:$0xff]
    %v708 = vld [vmem:[#allocation8 + $0x68] sm:$0xff]
    %v709 = vld [vmem:[#allocation8 + $0x70] sm:$0xff]
    %v710 = vld [vmem:[#allocation8 + $0x78] sm:$0xff]
    %v711 = vld [vmem:[#allocation8 + $0x80] sm:$0xff]
    %v712 = vld [vmem:[#allocation8 + $0x88] sm:$0xff]
    %v713 = vld [vmem:[#allocation8 + $0x90] sm:$0xff]
    %v714 = vld [vmem:[#allocation8 + $0x98] sm:$0xff]
    %v715 = vld [vmem:[#allocation8 + $0xa0] sm:$0xff]
    %v716 = vld [vmem:[#allocation8 + $0xa8] sm:$0xff]
    %v717 = vld [vmem:[#allocation8 + $0xb0] sm:$0xff]
    %v718 = vld [vmem:[#allocation8 + $0xb8] sm:$0xff]
    %v719 = vld [vmem:[#allocation8 + $0xc0] sm:$0xff]
    %v720 = vld [vmem:[#allocation8 + $0xc8] sm:$0xff]
    %v721 = vld [vmem:[#allocation8 + $0xd0] sm:$0xff]
    %v722 = vld [vmem:[#allocation8 + $0xd8] sm:$0xff]
    %v723 = vld [vmem:[#allocation8 + $0xe0] sm:$0xff]
    %v724 = vld [vmem:[#allocation8 + $0xe8] sm:$0xff]
    %v725 = vld [vmem:[#allocation8 + $0xf0] sm:$0xff]
    %v726 = vld [vmem:[#allocation8 + $0xf8] sm:$0xff]
    %v759 = vunpack.c.l.b16 %v695
    %v760 = vunpack.c.h.b16 %v695
    %v761 = vunpack.c.l.b16 %v696
    %v762 = vunpack.c.h.b16 %v696
    %v763 = vunpack.c.l.b16 %v697
    %v764 = vunpack.c.h.b16 %v697
    %v765 = vunpack.c.l.b16 %v698
    %v766 = vunpack.c.h.b16 %v698
    %v767 = vunpack.c.l.b16 %v699
    %v768 = vunpack.c.h.b16 %v699
    %v769 = vunpack.c.l.b16 %v700
    %v770 = vunpack.c.h.b16 %v700
    %v771 = vunpack.c.l.b16 %v701
    %v772 = vunpack.c.h.b16 %v701
    %v773 = vunpack.c.l.b16 %v702
    %v774 = vunpack.c.h.b16 %v702
    %v775 = vunpack.c.l.b16 %v703
    %v776 = vunpack.c.h.b16 %v703
    %v777 = vunpack.c.l.b16 %v704
    %v778 = vunpack.c.h.b16 %v704
    %v779 = vunpack.c.l.b16 %v705
    %v780 = vunpack.c.h.b16 %v705
    %v781 = vunpack.c.l.b16 %v706
    %v782 = vunpack.c.h.b16 %v706
    %v783 = vunpack.c.l.b16 %v707
    %v784 = vunpack.c.h.b16 %v707
    %v785 = vunpack.c.l.b16 %v708
    %v786 = vunpack.c.h.b16 %v708
    %v787 = vunpack.c.l.b16 %v709
    %v788 = vunpack.c.h.b16 %v709
    %v789 = vunpack.c.l.b16 %v710
    %v790 = vunpack.c.h.b16 %v710
    %v791 = vunpack.c.l.b16 %v711
    %v792 = vunpack.c.h.b16 %v711
    %v793 = vunpack.c.l.b16 %v712
    %v794 = vunpack.c.h.b16 %v712
    %v795 = vunpack.c.l.b16 %v713
    %v796 = vunpack.c.h.b16 %v713
    %v797 = vunpack.c.l.b16 %v714
    %v798 = vunpack.c.h.b16 %v714
    %v799 = vunpack.c.l.b16 %v715
    %v800 = vunpack.c.h.b16 %v715
    %v801 = vunpack.c.l.b16 %v716
    %v802 = vunpack.c.h.b16 %v716
    %v803 = vunpack.c.l.b16 %v717
    %v804 = vunpack.c.h.b16 %v717
    %v805 = vunpack.c.l.b16 %v718
    %v806 = vunpack.c.h.b16 %v718
    %v807 = vunpack.c.l.b16 %v719
    %v808 = vunpack.c.h.b16 %v719
    %v809 = vunpack.c.l.b16 %v720
    %v810 = vunpack.c.h.b16 %v720
    %v811 = vunpack.c.l.b16 %v721
    %v812 = vunpack.c.h.b16 %v721
    %v813 = vunpack.c.l.b16 %v722
    %v814 = vunpack.c.h.b16 %v722
    %v815 = vunpack.c.l.b16 %v723
    %v816 = vunpack.c.h.b16 %v723
    %v817 = vunpack.c.l.b16 %v724
    %v818 = vunpack.c.h.b16 %v724
    %v819 = vunpack.c.l.b16 %v725
    %v820 = vunpack.c.h.b16 %v725
    %v821 = vunpack.c.l.b16 %v726
    %v822 = vunpack.c.h.b16 %v726
    %v823 = vpack.c.b16 %v761, %v759
    %v824 = vpack.c.b16 %v762, %v760
    %v825 = vpack.c.b16 %v765, %v763
    %v826 = vpack.c.b16 %v766, %v764
    %v827 = vpack.c.b16 %v769, %v767
    %v828 = vpack.c.b16 %v770, %v768
    %v829 = vpack.c.b16 %v773, %v771
    %v830 = vpack.c.b16 %v774, %v772
    %v831 = vpack.c.b16 %v777, %v775
    %v832 = vpack.c.b16 %v778, %v776
    %v833 = vpack.c.b16 %v781, %v779
    %v834 = vpack.c.b16 %v782, %v780
    %v835 = vpack.c.b16 %v785, %v783
    %v836 = vpack.c.b16 %v786, %v784
    %v837 = vpack.c.b16 %v789, %v787
    %v838 = vpack.c.b16 %v790, %v788
    %v839 = vpack.c.b16 %v793, %v791
    %v840 = vpack.c.b16 %v794, %v792
    %v841 = vpack.c.b16 %v797, %v795
    %v842 = vpack.c.b16 %v798, %v796
    %v843 = vpack.c.b16 %v801, %v799
    %v844 = vpack.c.b16 %v802, %v800
    %v845 = vpack.c.b16 %v805, %v803
    %v846 = vpack.c.b16 %v806, %v804
    %v847 = vpack.c.b16 %v809, %v807
    %v848 = vpack.c.b16 %v810, %v808
    %v849 = vpack.c.b16 %v813, %v811
    %v850 = vpack.c.b16 %v814, %v812
    %v851 = vpack.c.b16 %v817, %v815
    %v852 = vpack.c.b16 %v818, %v816
    %v853 = vpack.c.b16 %v821, %v819
    %v854 = vpack.c.b16 %v822, %v820
    %887 = vmatpush.bf16.msra.mxu0 %v837
    %888 = vmatpush.bf16.msra.mxu0 %v835
    %889 = vmatpush.bf16.msra.mxu0 %v833
    %890 = vmatpush.bf16.msra.mxu0 %v831
    %891 = vmatpush.bf16.msra.mxu0 %v829
    %892 = vmatpush.bf16.msra.mxu0 %v827
    %893 = vmatpush.bf16.msra.mxu0 %v825
    %894 = vmatpush.bf16.msra.mxu0 %v823
    %895 = vmatmul.bf16.gmra.mxu0 %v693
    %v896 = vpop.f32.mrf.mxu0
    %v897 = vadd.f32 0.0, %v896
    %v898 = vpop.f32.mrf.mxu0
    %v899 = vadd.f32 0.0, %v898
    %900 = vdwg.mxu0
    %901 = vmatpush.bf16.msra.mxu0 %v853
    %902 = vmatpush.bf16.msra.mxu0 %v851
    %903 = vmatpush.bf16.msra.mxu0 %v849
    %904 = vmatpush.bf16.msra.mxu0 %v847
    %905 = vmatpush.bf16.msra.mxu0 %v845
    %906 = vmatpush.bf16.msra.mxu0 %v843
    %907 = vmatpush.bf16.msra.mxu0 %v841
    %908 = vmatpush.bf16.msra.mxu0 %v839
    %909 = vmatmul.bf16.gmra.mxu0 %v694
    %v910 = vpop.f32.mrf.mxu0
    %v911 = vadd.f32 %v897, %v910
    %v912 = vpop.f32.mrf.mxu0
    %v913 = vadd.f32 %v899, %v912
    %914 = vdwg.mxu0
    %915 = vmatpush.bf16.msra.mxu0 %v838
    %916 = vmatpush.bf16.msra.mxu0 %v836
    %917 = vmatpush.bf16.msra.mxu0 %v834
    %918 = vmatpush.bf16.msra.mxu0 %v832
    %919 = vmatpush.bf16.msra.mxu0 %v830
    %920 = vmatpush.bf16.msra.mxu0 %v828
    %921 = vmatpush.bf16.msra.mxu0 %v826
    %922 = vmatpush.bf16.msra.mxu0 %v824
    %923 = vmatmul.bf16.gmra.mxu0 %v693
    %v924 = vpop.f32.mrf.mxu0
    %v925 = vadd.f32 0.0, %v924
    %v926 = vpop.f32.mrf.mxu0
    %v927 = vadd.f32 0.0, %v926
    %928 = vdwg.mxu0
    %929 = vmatpush.bf16.msra.mxu0 %v854
    %930 = vmatpush.bf16.msra.mxu0 %v852
    %931 = vmatpush.bf16.msra.mxu0 %v850
    %932 = vmatpush.bf16.msra.mxu0 %v848
    %933 = vmatpush.bf16.msra.mxu0 %v846
    %934 = vmatpush.bf16.msra.mxu0 %v844
    %935 = vmatpush.bf16.msra.mxu0 %v842
    %936 = vmatpush.bf16.msra.mxu0 %v840
    %937 = vmatmul.bf16.gmra.mxu0 %v694
    %v938 = vpop.f32.mrf.mxu0
    %v939 = vadd.f32 %v925, %v938
    %v940 = vpop.f32.mrf.mxu0
    %v941 = vadd.f32 %v927, %v940
    %942 = vdwg.mxu0
    %943 = vst [vmem:[#allocation10] sm:$0xff] %v911
    %944 = vst [vmem:[#allocation10 + $0x8] sm:$0xff] %v939
    %945 = vst [vmem:[#allocation10 + $0x10] sm:$0xff] %v913
    %946 = vst [vmem:[#allocation10 + $0x18] sm:$0xff] %v941
    // Predicated region
    $region42: #{tpu_custom_call.1} parent=1 // pred_check
      _
    $region43: #{tpu_custom_call.1} parent=1 // pred_check_branch
      %948 = sbr.rel (0) target = $region45
    $region44: #{tpu_custom_call.1} parent=1 // pred_region
      %950 = vsyncadd [#allocation4], 0
      %s951 = sshll.u32 [#allocation10], 4
      %s952 = int_to_ptr.vmem [resolvable:$true] %s951
      %s953 = sshll.u32 %s6, 4
      %s954 = int_to_ptr.hbm [resolvable:$true] %s953
      %959 = dma.vmem_to_hbm [thread:$0]  %s952, 512, %s954, [#allocation4], 256, 256, 16
    $region45: #{tpu_custom_call.1} parent=1 // pred_fallthru
      _
    // Predicated region
    $region46: #{tpu_custom_call.1} parent=1 // pred_check
      _
    $region47: #{tpu_custom_call.1} parent=1 // pred_check_branch
      %961 = sbr.rel (0) target = $region49
    $region48: #{tpu_custom_call.1} parent=1 // pred_region
      %963 = dma.done [#allocation4], 512
    $region49: #{tpu_custom_call.1} parent=1 // pred_fallthru
      _
    %964 = vsyncpa [#allocation3], 1
    %965 = vsyncpa [#allocation6], 1
    %966 = vsyncpa [#allocation9], 1
    %967 = vsyncpa [#allocation4], 1

// kernel: tpu_custom_call.1
$region0: #{tpu_custom_call.1}
  #allocation0 [shape = 'u32[]', space=smem, size = 0x4, offset = 0x4, fixed_abs, tag = 'smem constant byte address 0x4 - core index']
  #allocation1 [shape = 'u32[72,128]{1,0:T(1,128)}', space=vmem, size = 0x9000, scoped, tag = 'internal scratch']
  %s0 = inlined_call_operand.hbm [shape: f32[16,256], index: 0, kind: input, shape index: {}]
  %s1 = inlined_call_operand.hbm [shape: bf16[256,256], index: 1, kind: input, shape index: {}]
  %s2 = inlined_call_operand.hbm [shape: bf16[256,256], index: 2, kind: input, shape index: {}]
  %s3 = inlined_call_operand.hbm [shape: bf16[256,256], index: 3, kind: input, shape index: {}]
  %s4 = inlined_call_operand.vmem [shape: f32[1,256], index: 4, kind: input, shape index: {}]
  %s5 = inlined_call_operand.vmem [shape: f32[1,256], index: 5, kind: input, shape index: {}]
  %s6 = inlined_call_operand.hbm [shape: f32[16,256], index: 6, kind: output, shape index: {}]
  %s7 = sld [smem:[#allocation0]]
  $region50: #{tpu_custom_call.1} parent=0
    _
  %s9 = ssub.s32 1, %s7
  %s10 = scalar_select 0, %s9, %s7
  $region1: #{tpu_custom_call.1} parent=0
    #allocation2 [shape = 'u8[16384]{0}', space=vmem, size = 0x4000, scoped, tag = 'input window, operand 0, single buffered']
    #allocation3 [shape = 's32[1]{0}', space=sflag, size = 0x4, scoped, tag = 'scoped memory for tpu_custom_call.1']
    #allocation4 [shape = 's32[1]{0}', space=sflag, size = 0x4, scoped, tag = 'scoped memory for tpu_custom_call.1']
    #allocation5 [shape = 'u8[131072]{0}', space=vmem, size = 0x20000, scoped, tag = 'input window, operand 1, single buffered']
    #allocation6 [shape = 's32[1]{0}', space=sflag, size = 0x4, scoped, tag = 'scoped memory for tpu_custom_call.1']
    #allocation7 [shape = 'u8[131072]{0}', space=vmem, size = 0x20000, scoped, tag = 'input window, operand 2, single buffered']
    #allocation8 [shape = 'u8[131072]{0}', space=vmem, size = 0x20000, scoped, tag = 'input window, operand 3, single buffered']
    #allocation9 [shape = 's32[1]{0}', space=sflag, size = 0x4, scoped, tag = 'scoped memory for tpu_custom_call.1']
    #allocation10 [shape = 'u8[16384]{0}', space=vmem, size = 0x4000, scoped, tag = 'output window, operand 0, single buffered']
    %11 = vsyncpa [#allocation3], 0
    %12 = vsyncpa [#allocation6], 0
    %13 = vsyncpa [#allocation9], 0
    %14 = vsyncpa [#allocation4], 0
    // Predicated region
    $region2: #{tpu_custom_call.1} parent=1 // pred_check
      _
    $region3: #{tpu_custom_call.1} parent=1 // pred_check_branch
      %16 = sbr.rel (0) target = $region5
    $region4: #{tpu_custom_call.1} parent=1 // pred_region
      %18 = vsyncadd [#allocation3], 0
      %s19 = sshll.u32 %s0, 4
      %s20 = int_to_ptr.hbm [resolvable:$true] %s19
      %s21 = sshll.u32 [#allocation2], 4
      %s22 = int_to_ptr.vmem [resolvable:$true] %s21
      %27 = dma.hbm_to_vmem [thread:$0]  %s20, 512, %s22, [#allocation3], 256, 256, 16
    $region5: #{tpu_custom_call.1} parent=1 // pred_fallthru
      _
    // Predicated region
    $region6: #{tpu_custom_call.1} parent=1 // pred_check
      _
    $region7: #{tpu_custom_call.1} parent=1 // pred_check_branch
      %29 = sbr.rel (0) target = $region9
    $region8: #{tpu_custom_call.1} parent=1 // pred_region
      %31 = vsyncadd [#allocation6], 0
      %s32 = sshll.u32 %s1, 4
      %s33 = int_to_ptr.hbm [resolvable:$true] %s32
      %s34 = sshll.u32 [#allocation5], 4
      %s35 = int_to_ptr.vmem [resolvable:$true] %s34
      %40 = dma.hbm_to_vmem [thread:$0]  %s33, 4096, %s35, [#allocation6], 128, 128, 8
    $region9: #{tpu_custom_call.1} parent=1 // pred_fallthru
      _
    // Predicated region
    $region10: #{tpu_custom_call.1} parent=1 // pred_check
      _
    $region11: #{tpu_custom_call.1} parent=1 // pred_check_branch
      %42 = sbr.rel (0) target = $region13
    $region12: #{tpu_custom_call.1} parent=1 // pred_region
      %44 = vsyncadd [#allocation6], 0
      %s45 = sshll.u32 %s2, 4
      %s46 = int_to_ptr.hbm [resolvable:$true] %s45
      %s47 = sshll.u32 [#allocation7], 4
      %s48 = int_to_ptr.vmem [resolvable:$true] %s47
      %53 = dma.hbm_to_vmem [thread:$0]  %s46, 4096, %s48, [#allocation6], 128, 128, 8
    $region13: #{tpu_custom_call.1} parent=1 // pred_fallthru
      _
    // Predicated region
    $region14: #{tpu_custom_call.1} parent=1 // pred_check
      _
    $region15: #{tpu_custom_call.1} parent=1 // pred_check_branch
      %55 = sbr.rel (0) target = $region17
    $region16: #{tpu_custom_call.1} parent=1 // pred_region
      %57 = vsyncadd [#allocation9], 0
      %s58 = sshll.u32 %s3, 4
      %s59 = int_to_ptr.hbm [resolvable:$true] %s58
      %s60 = sshll.u32 [#allocation8], 4
      %s61 = int_to_ptr.vmem [resolvable:$true] %s60
      %66 = dma.hbm_to_vmem [thread:$0]  %s59, 4096, %s61, [#allocation9], 128, 128, 8
    $region17: #{tpu_custom_call.1} parent=1 // pred_fallthru
      _
    // Predicated region
    $region18: #{tpu_custom_call.1} parent=1 // pred_check
      _
    $region19: #{tpu_custom_call.1} parent=1 // pred_check_branch
      %68 = sbr.rel (0) target = $region21
    $region20: #{tpu_custom_call.1} parent=1 // pred_region
      _
    $region21: #{tpu_custom_call.1} parent=1 // pred_fallthru
      _
    // Predicated region
    $region22: #{tpu_custom_call.1} parent=1 // pred_check
      _
    $region23: #{tpu_custom_call.1} parent=1 // pred_check_branch
      %70 = sbr.rel (0) target = $region25
    $region24: #{tpu_custom_call.1} parent=1 // pred_region
      _
    $region25: #{tpu_custom_call.1} parent=1 // pred_fallthru
      _
    // Predicated region
    $region26: #{tpu_custom_call.1} parent=1 // pred_check
      _
    $region27: #{tpu_custom_call.1} parent=1 // pred_check_branch
      %72 = sbr.rel (0) target = $region29
    $region28: #{tpu_custom_call.1} parent=1 // pred_region
      %74 = dma.done [#allocation3], 512
    $region29: #{tpu_custom_call.1} parent=1 // pred_fallthru
      _
    // Predicated region
    $region30: #{tpu_custom_call.1} parent=1 // pred_check
      _
    $region31: #{tpu_custom_call.1} parent=1 // pred_check_branch
      %76 = sbr.rel (0) target = $region33
    $region32: #{tpu_custom_call.1} parent=1 // pred_region
      %78 = dma.done [#allocation6], 4096
    $region33: #{tpu_custom_call.1} parent=1 // pred_fallthru
      _
    // Predicated region
    $region34: #{tpu_custom_call.1} parent=1 // pred_check
      _
    $region35: #{tpu_custom_call.1} parent=1 // pred_check_branch
      %80 = sbr.rel (0) target = $region37
    $region36: #{tpu_custom_call.1} parent=1 // pred_region
      %82 = dma.done [#allocation6], 4096
    $region37: #{tpu_custom_call.1} parent=1 // pred_fallthru
      _
    // Predicated region
    $region38: #{tpu_custom_call.1} parent=1 // pred_check
      _
    $region39: #{tpu_custom_call.1} parent=1 // pred_check_branch
      %84 = sbr.rel (0) target = $region41
    $region40: #{tpu_custom_call.1} parent=1 // pred_region
      %86 = dma.done [#allocation9], 4096
    $region41: #{tpu_custom_call.1} parent=1 // pred_fallthru
      _
    %v87 = vld [vmem:[#allocation2] sm:$0xff]
    %v88 = vld [vmem:[#allocation2 + $0x8] sm:$0xff]
    %v89 = vld [vmem:[#allocation2 + $0x10] sm:$0xff]
    %v90 = vld [vmem:[#allocation2 + $0x18] sm:$0xff]
    %v91 = vpack.c.bf16 %v89, %v87
    %v92 = vpack.c.bf16 %v90, %v88
    %v93 = vld [vmem:[#allocation5] sm:$0xff]
    %v94 = vld [vmem:[#allocation5 + $0x8] sm:$0xff]
    %v95 = vld [vmem:[#allocation5 + $0x10] sm:$0xff]
    %v96 = vld [vmem:[#allocation5 + $0x18] sm:$0xff]
    %v97 = vld [vmem:[#allocation5 + $0x20] sm:$0xff]
    %v98 = vld [vmem:[#allocation5 + $0x28] sm:$0xff]
    %v99 = vld [vmem:[#allocation5 + $0x30] sm:$0xff]
    %v100 = vld [vmem:[#allocation5 + $0x38] sm:$0xff]
    %v101 = vld [vmem:[#allocation5 + $0x40] sm:$0xff]
    %v102 = vld [vmem:[#allocation5 + $0x48] sm:$0xff]
    %v103 = vld [vmem:[#allocation5 + $0x50] sm:$0xff]
    %v104 = vld [vmem:[#allocation5 + $0x58] sm:$0xff]
    %v105 = vld [vmem:[#allocation5 + $0x60] sm:$0xff]
    %v106 = vld [vmem:[#allocation5 + $0x68] sm:$0xff]
    %v107 = vld [vmem:[#allocation5 + $0x70] sm:$0xff]
    %v108 = vld [vmem:[#allocation5 + $0x78] sm:$0xff]
    %v109 = vld [vmem:[#allocation5 + $0x80] sm:$0xff]
    %v110 = vld [vmem:[#allocation5 + $0x88] sm:$0xff]
    %v111 = vld [vmem:[#allocation5 + $0x90] sm:$0xff]
    %v112 = vld [vmem:[#allocation5 + $0x98] sm:$0xff]
    %v113 = vld [vmem:[#allocation5 + $0xa0] sm:$0xff]
    %v114 = vld [vmem:[#allocation5 + $0xa8] sm:$0xff]
    %v115 = vld [vmem:[#allocation5 + $0xb0] sm:$0xff]
    %v116 = vld [vmem:[#allocation5 + $0xb8] sm:$0xff]
    %v117 = vld [vmem:[#allocation5 + $0xc0] sm:$0xff]
    %v118 = vld [vmem:[#allocation5 + $0xc8] sm:$0xff]
    %v119 = vld [vmem:[#allocation5 + $0xd0] sm:$0xff]
    %v120 = vld [vmem:[#allocation5 + $0xd8] sm:$0xff]
    %v121 = vld [vmem:[#allocation5 + $0xe0] sm:$0xff]
    %v122 = vld [vmem:[#allocation5 + $0xe8] sm:$0xff]
    %v123 = vld [vmem:[#allocation5 + $0xf0] sm:$0xff]
    %v124 = vld [vmem:[#allocation5 + $0xf8] sm:$0xff]
    %v157 = vunpack.c.l.b16 %v93
    %v158 = vunpack.c.h.b16 %v93
    %v159 = vunpack.c.l.b16 %v94
    %v160 = vunpack.c.h.b16 %v94
    %v161 = vunpack.c.l.b16 %v95
    %v162 = vunpack.c.h.b16 %v95
    %v163 = vunpack.c.l.b16 %v96
    %v164 = vunpack.c.h.b16 %v96
    %v165 = vunpack.c.l.b16 %v97
    %v166 = vunpack.c.h.b16 %v97
    %v167 = vunpack.c.l.b16 %v98
    %v168 = vunpack.c.h.b16 %v98
    %v169 = vunpack.c.l.b16 %v99
    %v170 = vunpack.c.h.b16 %v99
    %v171 = vunpack.c.l.b16 %v100
    %v172 = vunpack.c.h.b16 %v100
    %v173 = vunpack.c.l.b16 %v101
    %v174 = vunpack.c.h.b16 %v101
    %v175 = vunpack.c.l.b16 %v102
    %v176 = vunpack.c.h.b16 %v102
    %v177 = vunpack.c.l.b16 %v103
    %v178 = vunpack.c.h.b16 %v103
    %v179 = vunpack.c.l.b16 %v104
    %v180 = vunpack.c.h.b16 %v104
    %v181 = vunpack.c.l.b16 %v105
    %v182 = vunpack.c.h.b16 %v105
    %v183 = vunpack.c.l.b16 %v106
    %v184 = vunpack.c.h.b16 %v106
    %v185 = vunpack.c.l.b16 %v107
    %v186 = vunpack.c.h.b16 %v107
    %v187 = vunpack.c.l.b16 %v108
    %v188 = vunpack.c.h.b16 %v108
    %v189 = vunpack.c.l.b16 %v109
    %v190 = vunpack.c.h.b16 %v109
    %v191 = vunpack.c.l.b16 %v110
    %v192 = vunpack.c.h.b16 %v110
    %v193 = vunpack.c.l.b16 %v111
    %v194 = vunpack.c.h.b16 %v111
    %v195 = vunpack.c.l.b16 %v112
    %v196 = vunpack.c.h.b16 %v112
    %v197 = vunpack.c.l.b16 %v113
    %v198 = vunpack.c.h.b16 %v113
    %v199 = vunpack.c.l.b16 %v114
    %v200 = vunpack.c.h.b16 %v114
    %v201 = vunpack.c.l.b16 %v115
    %v202 = vunpack.c.h.b16 %v115
    %v203 = vunpack.c.l.b16 %v116
    %v204 = vunpack.c.h.b16 %v116
    %v205 = vunpack.c.l.b16 %v117
    %v206 = vunpack.c.h.b16 %v117
    %v207 = vunpack.c.l.b16 %v118
    %v208 = vunpack.c.h.b16 %v118
    %v209 = vunpack.c.l.b16 %v119
    %v210 = vunpack.c.h.b16 %v119
    %v211 = vunpack.c.l.b16 %v120
    %v212 = vunpack.c.h.b16 %v120
    %v213 = vunpack.c.l.b16 %v121
    %v214 = vunpack.c.h.b16 %v121
    %v215 = vunpack.c.l.b16 %v122
    %v216 = vunpack.c.h.b16 %v122
    %v217 = vunpack.c.l.b16 %v123
    %v218 = vunpack.c.h.b16 %v123
    %v219 = vunpack.c.l.b16 %v124
    %v220 = vunpack.c.h.b16 %v124
    %v221 = vpack.c.b16 %v159, %v157
    %v222 = vpack.c.b16 %v160, %v158
    %v223 = vpack.c.b16 %v163, %v161
    %v224 = vpack.c.b16 %v164, %v162
    %v225 = vpack.c.b16 %v167, %v165
    %v226 = vpack.c.b16 %v168, %v166
    %v227 = vpack.c.b16 %v171, %v169
    %v228 = vpack.c.b16 %v172, %v170
    %v229 = vpack.c.b16 %v175, %v173
    %v230 = vpack.c.b16 %v176, %v174
    %v231 = vpack.c.b16 %v179, %v177
    %v232 = vpack.c.b16 %v180, %v178
    %v233 = vpack.c.b16 %v183, %v181
    %v234 = vpack.c.b16 %v184, %v182
    %v235 = vpack.c.b16 %v187, %v185
    %v236 = vpack.c.b16 %v188, %v186
    %v237 = vpack.c.b16 %v191, %v189
    %v238 = vpack.c.b16 %v192, %v190
    %v239 = vpack.c.b16 %v195, %v193
    %v240 = vpack.c.b16 %v196, %v194
    %v241 = vpack.c.b16 %v199, %v197
    %v242 = vpack.c.b16 %v200, %v198
    %v243 = vpack.c.b16 %v203, %v201
    %v244 = vpack.c.b16 %v204, %v202
    %v245 = vpack.c.b16 %v207, %v205
    %v246 = vpack.c.b16 %v208, %v206
    %v247 = vpack.c.b16 %v211, %v209
    %v248 = vpack.c.b16 %v212, %v210
    %v249 = vpack.c.b16 %v215, %v213
    %v250 = vpack.c.b16 %v216, %v214
    %v251 = vpack.c.b16 %v219, %v217
    %v252 = vpack.c.b16 %v220, %v218
    %285 = vmatpush.bf16.msra.mxu0 %v235
    %286 = vmatpush.bf16.msra.mxu0 %v233
    %287 = vmatpush.bf16.msra.mxu0 %v231
    %288 = vmatpush.bf16.msra.mxu0 %v229
    %289 = vmatpush.bf16.msra.mxu0 %v227
    %290 = vmatpush.bf16.msra.mxu0 %v225
    %291 = vmatpush.bf16.msra.mxu0 %v223
    %292 = vmatpush.bf16.msra.mxu0 %v221
    %293 = vmatmul.bf16.gmra.mxu0 %v91
    %v294 = vpop.f32.mrf.mxu0
    %v295 = vadd.f32 0.0, %v294
    %v296 = vpop.f32.mrf.mxu0
    %v297 = vadd.f32 0.0, %v296
    %298 = vdwg.mxu0
    %299 = vmatpush.bf16.msra.mxu0 %v251
    %300 = vmatpush.bf16.msra.mxu0 %v249
    %301 = vmatpush.bf16.msra.mxu0 %v247
    %302 = vmatpush.bf16.msra.mxu0 %v245
    %303 = vmatpush.bf16.msra.mxu0 %v243
    %304 = vmatpush.bf16.msra.mxu0 %v241
    %305 = vmatpush.bf16.msra.mxu0 %v239
    %306 = vmatpush.bf16.msra.mxu0 %v237
    %307 = vmatmul.bf16.gmra.mxu0 %v92
    %v308 = vpop.f32.mrf.mxu0
    %v309 = vadd.f32 %v295, %v308
    %v310 = vpop.f32.mrf.mxu0
    %v311 = vadd.f32 %v297, %v310
    %312 = vdwg.mxu0
    %313 = vmatpush.bf16.msra.mxu0 %v236
    %314 = vmatpush.bf16.msra.mxu0 %v234
    %315 = vmatpush.bf16.msra.mxu0 %v232
    %316 = vmatpush.bf16.msra.mxu0 %v230
    %317 = vmatpush.bf16.msra.mxu0 %v228
    %318 = vmatpush.bf16.msra.mxu0 %v226
    %319 = vmatpush.bf16.msra.mxu0 %v224
    %320 = vmatpush.bf16.msra.mxu0 %v222
    %321 = vmatmul.bf16.gmra.mxu0 %v91
    %v322 = vpop.f32.mrf.mxu0
    %v323 = vadd.f32 0.0, %v322
    %v324 = vpop.f32.mrf.mxu0
    %v325 = vadd.f32 0.0, %v324
    %326 = vdwg.mxu0
    %327 = vmatpush.bf16.msra.mxu0 %v252
    %328 = vmatpush.bf16.msra.mxu0 %v250
    %329 = vmatpush.bf16.msra.mxu0 %v248
    %330 = vmatpush.bf16.msra.mxu0 %v246
    %331 = vmatpush.bf16.msra.mxu0 %v244
    %332 = vmatpush.bf16.msra.mxu0 %v242
    %333 = vmatpush.bf16.msra.mxu0 %v240
    %334 = vmatpush.bf16.msra.mxu0 %v238
    %335 = vmatmul.bf16.gmra.mxu0 %v92
    %v336 = vpop.f32.mrf.mxu0
    %v337 = vadd.f32 %v323, %v336
    %v338 = vpop.f32.mrf.mxu0
    %v339 = vadd.f32 %v325, %v338
    %340 = vdwg.mxu0
    %v341 = vld [vmem:[#allocation7] sm:$0xff]
    %v342 = vld [vmem:[#allocation7 + $0x8] sm:$0xff]
    %v343 = vld [vmem:[#allocation7 + $0x10] sm:$0xff]
    %v344 = vld [vmem:[#allocation7 + $0x18] sm:$0xff]
    %v345 = vld [vmem:[#allocation7 + $0x20] sm:$0xff]
    %v346 = vld [vmem:[#allocation7 + $0x28] sm:$0xff]
    %v347 = vld [vmem:[#allocation7 + $0x30] sm:$0xff]
    %v348 = vld [vmem:[#allocation7 + $0x38] sm:$0xff]
    %v349 = vld [vmem:[#allocation7 + $0x40] sm:$0xff]
    %v350 = vld [vmem:[#allocation7 + $0x48] sm:$0xff]
    %v351 = vld [vmem:[#allocation7 + $0x50] sm:$0xff]
    %v352 = vld [vmem:[#allocation7 + $0x58] sm:$0xff]
    %v353 = vld [vmem:[#allocation7 + $0x60] sm:$0xff]
    %v354 = vld [vmem:[#allocation7 + $0x68] sm:$0xff]
    %v355 = vld [vmem:[#allocation7 + $0x70] sm:$0xff]
    %v356 = vld [vmem:[#allocation7 + $0x78] sm:$0xff]
    %v357 = vld [vmem:[#allocation7 + $0x80] sm:$0xff]
    %v358 = vld [vmem:[#allocation7 + $0x88] sm:$0xff]
    %v359 = vld [vmem:[#allocation7 + $0x90] sm:$0xff]
    %v360 = vld [vmem:[#allocation7 + $0x98] sm:$0xff]
    %v361 = vld [vmem:[#allocation7 + $0xa0] sm:$0xff]
    %v362 = vld [vmem:[#allocation7 + $0xa8] sm:$0xff]
    %v363 = vld [vmem:[#allocation7 + $0xb0] sm:$0xff]
    %v364 = vld [vmem:[#allocation7 + $0xb8] sm:$0xff]
    %v365 = vld [vmem:[#allocation7 + $0xc0] sm:$0xff]
    %v366 = vld [vmem:[#allocation7 + $0xc8] sm:$0xff]
    %v367 = vld [vmem:[#allocation7 + $0xd0] sm:$0xff]
    %v368 = vld [vmem:[#allocation7 + $0xd8] sm:$0xff]
    %v369 = vld [vmem:[#allocation7 + $0xe0] sm:$0xff]
    %v370 = vld [vmem:[#allocation7 + $0xe8] sm:$0xff]
    %v371 = vld [vmem:[#allocation7 + $0xf0] sm:$0xff]
    %v372 = vld [vmem:[#allocation7 + $0xf8] sm:$0xff]
    %v405 = vunpack.c.l.b16 %v341
    %v406 = vunpack.c.h.b16 %v341
    %v407 = vunpack.c.l.b16 %v342
    %v408 = vunpack.c.h.b16 %v342
    %v409 = vunpack.c.l.b16 %v343
    %v410 = vunpack.c.h.b16 %v343
    %v411 = vunpack.c.l.b16 %v344
    %v412 = vunpack.c.h.b16 %v344
    %v413 = vunpack.c.l.b16 %v345
    %v414 = vunpack.c.h.b16 %v345
    %v415 = vunpack.c.l.b16 %v346
    %v416 = vunpack.c.h.b16 %v346
    %v417 = vunpack.c.l.b16 %v347
    %v418 = vunpack.c.h.b16 %v347
    %v419 = vunpack.c.l.b16 %v348
    %v420 = vunpack.c.h.b16 %v348
    %v421 = vunpack.c.l.b16 %v349
    %v422 = vunpack.c.h.b16 %v349
    %v423 = vunpack.c.l.b16 %v350
    %v424 = vunpack.c.h.b16 %v350
    %v425 = vunpack.c.l.b16 %v351
    %v426 = vunpack.c.h.b16 %v351
    %v427 = vunpack.c.l.b16 %v352
    %v428 = vunpack.c.h.b16 %v352
    %v429 = vunpack.c.l.b16 %v353
    %v430 = vunpack.c.h.b16 %v353
    %v431 = vunpack.c.l.b16 %v354
    %v432 = vunpack.c.h.b16 %v354
    %v433 = vunpack.c.l.b16 %v355
    %v434 = vunpack.c.h.b16 %v355
    %v435 = vunpack.c.l.b16 %v356
    %v436 = vunpack.c.h.b16 %v356
    %v437 = vunpack.c.l.b16 %v357
    %v438 = vunpack.c.h.b16 %v357
    %v439 = vunpack.c.l.b16 %v358
    %v440 = vunpack.c.h.b16 %v358
    %v441 = vunpack.c.l.b16 %v359
    %v442 = vunpack.c.h.b16 %v359
    %v443 = vunpack.c.l.b16 %v360
    %v444 = vunpack.c.h.b16 %v360
    %v445 = vunpack.c.l.b16 %v361
    %v446 = vunpack.c.h.b16 %v361
    %v447 = vunpack.c.l.b16 %v362
    %v448 = vunpack.c.h.b16 %v362
    %v449 = vunpack.c.l.b16 %v363
    %v450 = vunpack.c.h.b16 %v363
    %v451 = vunpack.c.l.b16 %v364
    %v452 = vunpack.c.h.b16 %v364
    %v453 = vunpack.c.l.b16 %v365
    %v454 = vunpack.c.h.b16 %v365
    %v455 = vunpack.c.l.b16 %v366
    %v456 = vunpack.c.h.b16 %v366
    %v457 = vunpack.c.l.b16 %v367
    %v458 = vunpack.c.h.b16 %v367
    %v459 = vunpack.c.l.b16 %v368
    %v460 = vunpack.c.h.b16 %v368
    %v461 = vunpack.c.l.b16 %v369
    %v462 = vunpack.c.h.b16 %v369
    %v463 = vunpack.c.l.b16 %v370
    %v464 = vunpack.c.h.b16 %v370
    %v465 = vunpack.c.l.b16 %v371
    %v466 = vunpack.c.h.b16 %v371
    %v467 = vunpack.c.l.b16 %v372
    %v468 = vunpack.c.h.b16 %v372
    %v469 = vpack.c.b16 %v407, %v405
    %v470 = vpack.c.b16 %v408, %v406
    %v471 = vpack.c.b16 %v411, %v409
    %v472 = vpack.c.b16 %v412, %v410
    %v473 = vpack.c.b16 %v415, %v413
    %v474 = vpack.c.b16 %v416, %v414
    %v475 = vpack.c.b16 %v419, %v417
    %v476 = vpack.c.b16 %v420, %v418
    %v477 = vpack.c.b16 %v423, %v421
    %v478 = vpack.c.b16 %v424, %v422
    %v479 = vpack.c.b16 %v427, %v425
    %v480 = vpack.c.b16 %v428, %v426
    %v481 = vpack.c.b16 %v431, %v429
    %v482 = vpack.c.b16 %v432, %v430
    %v483 = vpack.c.b16 %v435, %v433
    %v484 = vpack.c.b16 %v436, %v434
    %v485 = vpack.c.b16 %v439, %v437
    %v486 = vpack.c.b16 %v440, %v438
    %v487 = vpack.c.b16 %v443, %v441
    %v488 = vpack.c.b16 %v444, %v442
    %v489 = vpack.c.b16 %v447, %v445
    %v490 = vpack.c.b16 %v448, %v446
    %v491 = vpack.c.b16 %v451, %v449
    %v492 = vpack.c.b16 %v452, %v450
    %v493 = vpack.c.b16 %v455, %v453
    %v494 = vpack.c.b16 %v456, %v454
    %v495 = vpack.c.b16 %v459, %v457
    %v496 = vpack.c.b16 %v460, %v458
    %v497 = vpack.c.b16 %v463, %v461
    %v498 = vpack.c.b16 %v464, %v462
    %v499 = vpack.c.b16 %v467, %v465
    %v500 = vpack.c.b16 %v468, %v466
    %533 = vmatpush.bf16.msra.mxu0 %v483
    %534 = vmatpush.bf16.msra.mxu0 %v481
    %535 = vmatpush.bf16.msra.mxu0 %v479
    %536 = vmatpush.bf16.msra.mxu0 %v477
    %537 = vmatpush.bf16.msra.mxu0 %v475
    %538 = vmatpush.bf16.msra.mxu0 %v473
    %539 = vmatpush.bf16.msra.mxu0 %v471
    %540 = vmatpush.bf16.msra.mxu0 %v469
    %541 = vmatmul.bf16.gmra.mxu0 %v91
    %v542 = vpop.f32.mrf.mxu0
    %v543 = vadd.f32 0.0, %v542
    %v544 = vpop.f32.mrf.mxu0
    %v545 = vadd.f32 0.0, %v544
    %546 = vdwg.mxu0
    %547 = vmatpush.bf16.msra.mxu0 %v499
    %548 = vmatpush.bf16.msra.mxu0 %v497
    %549 = vmatpush.bf16.msra.mxu0 %v495
    %550 = vmatpush.bf16.msra.mxu0 %v493
    %551 = vmatpush.bf16.msra.mxu0 %v491
    %552 = vmatpush.bf16.msra.mxu0 %v489
    %553 = vmatpush.bf16.msra.mxu0 %v487
    %554 = vmatpush.bf16.msra.mxu0 %v485
    %555 = vmatmul.bf16.gmra.mxu0 %v92
    %v556 = vpop.f32.mrf.mxu0
    %v557 = vadd.f32 %v543, %v556
    %v558 = vpop.f32.mrf.mxu0
    %v559 = vadd.f32 %v545, %v558
    %560 = vdwg.mxu0
    %561 = vmatpush.bf16.msra.mxu0 %v484
    %562 = vmatpush.bf16.msra.mxu0 %v482
    %563 = vmatpush.bf16.msra.mxu0 %v480
    %564 = vmatpush.bf16.msra.mxu0 %v478
    %565 = vmatpush.bf16.msra.mxu0 %v476
    %566 = vmatpush.bf16.msra.mxu0 %v474
    %567 = vmatpush.bf16.msra.mxu0 %v472
    %568 = vmatpush.bf16.msra.mxu0 %v470
    %569 = vmatmul.bf16.gmra.mxu0 %v91
    %v570 = vpop.f32.mrf.mxu0
    %v571 = vadd.f32 0.0, %v570
    %v572 = vpop.f32.mrf.mxu0
    %v573 = vadd.f32 0.0, %v572
    %574 = vdwg.mxu0
    %575 = vmatpush.bf16.msra.mxu0 %v500
    %576 = vmatpush.bf16.msra.mxu0 %v498
    %577 = vmatpush.bf16.msra.mxu0 %v496
    %578 = vmatpush.bf16.msra.mxu0 %v494
    %579 = vmatpush.bf16.msra.mxu0 %v492
    %580 = vmatpush.bf16.msra.mxu0 %v490
    %581 = vmatpush.bf16.msra.mxu0 %v488
    %582 = vmatpush.bf16.msra.mxu0 %v486
    %583 = vmatmul.bf16.gmra.mxu0 %v92
    %v584 = vpop.f32.mrf.mxu0
    %v585 = vadd.f32 %v571, %v584
    %v586 = vpop.f32.mrf.mxu0
    %v587 = vadd.f32 %v573, %v586
    %588 = vdwg.mxu0
    %v589 = vld [vmem:[%s4] sm:$0x3]
    %v591 = vperm.slane %v589, 0
    %v592 = vperm.slane %v589, 1
    %v595 = vmul.f32 %v309, %v591
    %v596 = vmul.f32 %v337, %v592
    %v597 = vmul.f32 %v311, %v591
    %v598 = vmul.f32 %v339, %v592
    %v599 = vld [vmem:[%s5] sm:$0x3]
    %v601 = vperm.slane %v599, 0
    %v602 = vperm.slane %v599, 1
    %v605 = vmul.f32 %v557, %v601
    %v606 = vmul.f32 %v585, %v602
    %v607 = vmul.f32 %v559, %v601
    %v608 = vmul.f32 %v587, %v602
    %v609 = vxor.u32 %v605, 2147483648
    %v610 = vxor.u32 %v606, 2147483648
    %v611 = vxor.u32 %v607, 2147483648
    %v612 = vxor.u32 %v608, 2147483648
    %v613 = vmul.f32 %v609, 1.442695
    %v614 = vpow.pop %v613
    %v615 = vmul.f32 %v610, 1.442695
    %v616 = vpow.pop %v615
    %v617 = vmul.f32 %v611, 1.442695
    %v618 = vpow.pop %v617
    %v619 = vmul.f32 %v612, 1.442695
    %v620 = vpow.pop %v619
    %v621 = vadd.f32 %v614, 1.0
    %v622 = vadd.f32 %v616, 1.0
    %v623 = vadd.f32 %v618, 1.0
    %v624 = vadd.f32 %v620, 1.0
    %v625 = vrcp.pop %v621
    %v626 = vmul.f32 %v621, %v625
    %v627 = vsub.f32 1.0, %v626
    %v628 = vmul.f32 %v625, %v627
    %v629 = vadd.f32 %v625, %v628
    %vm630 = vweird.f32 %v621
    %vm631 = vweird.f32 %v625
    %vm632 = vmor %vm630, %vm631
    %v633 = vsel %vm632, %v625, %v629
    %v634 = vand.u32 2147483647, %v621
    %vm635 = vcmp.eq.f32.partialorder %v634, 8.507059e+37
    %v636 = vand.u32 %v621, 2147483648
    %v637 = vor.u32 1.1754944e-38, %v636
    %v638 = vsel %vm635, %v637, %v633
    %v639 = vmul.f32 1.0, %v638
    %v640 = vrcp.pop %v622
    %v641 = vmul.f32 %v622, %v640
    %v642 = vsub.f32 1.0, %v641
    %v643 = vmul.f32 %v640, %v642
    %v644 = vadd.f32 %v640, %v643
    %vm645 = vweird.f32 %v622
    %vm646 = vweird.f32 %v640
    %vm647 = vmor %vm645, %vm646
    %v648 = vsel %vm647, %v640, %v644
    %v649 = vand.u32 2147483647, %v622
    %vm650 = vcmp.eq.f32.partialorder %v649, 8.507059e+37
    %v651 = vand.u32 %v622, 2147483648
    %v652 = vor.u32 1.1754944e-38, %v651
    %v653 = vsel %vm650, %v652, %v648
    %v654 = vmul.f32 1.0, %v653
    %v655 = vrcp.pop %v623
    %v656 = vmul.f32 %v623, %v655
    %v657 = vsub.f32 1.0, %v656
    %v658 = vmul.f32 %v655, %v657
    %v659 = vadd.f32 %v655, %v658
    %vm660 = vweird.f32 %v623
    %vm661 = vweird.f32 %v655
    %vm662 = vmor %vm660, %vm661
    %v663 = vsel %vm662, %v655, %v659
    %v664 = vand.u32 2147483647, %v623
    %vm665 = vcmp.eq.f32.partialorder %v664, 8.507059e+37
    %v666 = vand.u32 %v623, 2147483648
    %v667 = vor.u32 1.1754944e-38, %v666
    %v668 = vsel %vm665, %v667, %v663
    %v669 = vmul.f32 1.0, %v668
    %v670 = vrcp.pop %v624
    %v671 = vmul.f32 %v624, %v670
    %v672 = vsub.f32 1.0, %v671
    %v673 = vmul.f32 %v670, %v672
    %v674 = vadd.f32 %v670, %v673
    %vm675 = vweird.f32 %v624
    %vm676 = vweird.f32 %v670
    %vm677 = vmor %vm675, %vm676
    %v678 = vsel %vm677, %v670, %v674
    %v679 = vand.u32 2147483647, %v624
    %vm680 = vcmp.eq.f32.partialorder %v679, 8.507059e+37
    %v681 = vand.u32 %v624, 2147483648
    %v682 = vor.u32 1.1754944e-38, %v681
    %v683 = vsel %vm680, %v682, %v678
    %v684 = vmul.f32 1.0, %v683
    %v685 = vmul.f32 %v605, %v639
    %v686 = vmul.f32 %v606, %v654
    %v687 = vmul.f32 %v607, %v669
    %v688 = vmul.f32 %v608, %v684
    %v689 = vmul.f32 %v685, %v595
    %v690 = vmul.f32 %v686, %v596
    %v691 = vmul.f32 %v687, %v597
    %v692 = vmul.f32 %v688, %v598
    %v693 = vpack.c.bf16 %v691, %v689
    %v694 = vpack.c.bf16 %v692, %v690
    %v695 = vld [vmem:[#allocation8] sm:$0xff]
    %v696 = vld [vmem:[#allocation8 + $0x8] sm:$0xff]
    %v697 = vld [vmem:[#allocation8 + $0x10] sm:$0xff]
    %v698 = vld [vmem:[#allocation8 + $0x18] sm:$0xff]
    %v699 = vld [vmem:[#allocation8 + $0x20] sm:$0xff]
    %v700 = vld [vmem:[#allocation8 + $0x28] sm:$0xff]
    %v701 = vld [vmem:[#allocation8 + $0x30] sm:$0xff]
    %v702 = vld [vmem:[#allocation8 + $0x38] sm:$0xff]
    %v703 = vld [vmem:[#allocation8 + $0x40] sm:$0xff]
    %v704 = vld [vmem:[#allocation8 + $0x48] sm:$0xff]
    %v705 = vld [vmem:[#allocation8 + $0x50] sm:$0xff]
    %v706 = vld [vmem:[#allocation8 + $0x58] sm:$0xff]
    %v707 = vld [vmem:[#allocation8 + $0x60] sm:$0xff]
    %v708 = vld [vmem:[#allocation8 + $0x68] sm:$0xff]
    %v709 = vld [vmem:[#allocation8 + $0x70] sm:$0xff]
    %v710 = vld [vmem:[#allocation8 + $0x78] sm:$0xff]
    %v711 = vld [vmem:[#allocation8 + $0x80] sm:$0xff]
    %v712 = vld [vmem:[#allocation8 + $0x88] sm:$0xff]
    %v713 = vld [vmem:[#allocation8 + $0x90] sm:$0xff]
    %v714 = vld [vmem:[#allocation8 + $0x98] sm:$0xff]
    %v715 = vld [vmem:[#allocation8 + $0xa0] sm:$0xff]
    %v716 = vld [vmem:[#allocation8 + $0xa8] sm:$0xff]
    %v717 = vld [vmem:[#allocation8 + $0xb0] sm:$0xff]
    %v718 = vld [vmem:[#allocation8 + $0xb8] sm:$0xff]
    %v719 = vld [vmem:[#allocation8 + $0xc0] sm:$0xff]
    %v720 = vld [vmem:[#allocation8 + $0xc8] sm:$0xff]
    %v721 = vld [vmem:[#allocation8 + $0xd0] sm:$0xff]
    %v722 = vld [vmem:[#allocation8 + $0xd8] sm:$0xff]
    %v723 = vld [vmem:[#allocation8 + $0xe0] sm:$0xff]
    %v724 = vld [vmem:[#allocation8 + $0xe8] sm:$0xff]
    %v725 = vld [vmem:[#allocation8 + $0xf0] sm:$0xff]
    %v726 = vld [vmem:[#allocation8 + $0xf8] sm:$0xff]
    %v759 = vunpack.c.l.b16 %v695
    %v760 = vunpack.c.h.b16 %v695
    %v761 = vunpack.c.l.b16 %v696
    %v762 = vunpack.c.h.b16 %v696
    %v763 = vunpack.c.l.b16 %v697
    %v764 = vunpack.c.h.b16 %v697
    %v765 = vunpack.c.l.b16 %v698
    %v766 = vunpack.c.h.b16 %v698
    %v767 = vunpack.c.l.b16 %v699
    %v768 = vunpack.c.h.b16 %v699
    %v769 = vunpack.c.l.b16 %v700
    %v770 = vunpack.c.h.b16 %v700
    %v771 = vunpack.c.l.b16 %v701
    %v772 = vunpack.c.h.b16 %v701
    %v773 = vunpack.c.l.b16 %v702
    %v774 = vunpack.c.h.b16 %v702
    %v775 = vunpack.c.l.b16 %v703
    %v776 = vunpack.c.h.b16 %v703
    %v777 = vunpack.c.l.b16 %v704
    %v778 = vunpack.c.h.b16 %v704
    %v779 = vunpack.c.l.b16 %v705
    %v780 = vunpack.c.h.b16 %v705
    %v781 = vunpack.c.l.b16 %v706
    %v782 = vunpack.c.h.b16 %v706
    %v783 = vunpack.c.l.b16 %v707
    %v784 = vunpack.c.h.b16 %v707
    %v785 = vunpack.c.l.b16 %v708
    %v786 = vunpack.c.h.b16 %v708
    %v787 = vunpack.c.l.b16 %v709
    %v788 = vunpack.c.h.b16 %v709
    %v789 = vunpack.c.l.b16 %v710
    %v790 = vunpack.c.h.b16 %v710
    %v791 = vunpack.c.l.b16 %v711
    %v792 = vunpack.c.h.b16 %v711
    %v793 = vunpack.c.l.b16 %v712
    %v794 = vunpack.c.h.b16 %v712
    %v795 = vunpack.c.l.b16 %v713
    %v796 = vunpack.c.h.b16 %v713
    %v797 = vunpack.c.l.b16 %v714
    %v798 = vunpack.c.h.b16 %v714
    %v799 = vunpack.c.l.b16 %v715
    %v800 = vunpack.c.h.b16 %v715
    %v801 = vunpack.c.l.b16 %v716
    %v802 = vunpack.c.h.b16 %v716
    %v803 = vunpack.c.l.b16 %v717
    %v804 = vunpack.c.h.b16 %v717
    %v805 = vunpack.c.l.b16 %v718
    %v806 = vunpack.c.h.b16 %v718
    %v807 = vunpack.c.l.b16 %v719
    %v808 = vunpack.c.h.b16 %v719
    %v809 = vunpack.c.l.b16 %v720
    %v810 = vunpack.c.h.b16 %v720
    %v811 = vunpack.c.l.b16 %v721
    %v812 = vunpack.c.h.b16 %v721
    %v813 = vunpack.c.l.b16 %v722
    %v814 = vunpack.c.h.b16 %v722
    %v815 = vunpack.c.l.b16 %v723
    %v816 = vunpack.c.h.b16 %v723
    %v817 = vunpack.c.l.b16 %v724
    %v818 = vunpack.c.h.b16 %v724
    %v819 = vunpack.c.l.b16 %v725
    %v820 = vunpack.c.h.b16 %v725
    %v821 = vunpack.c.l.b16 %v726
    %v822 = vunpack.c.h.b16 %v726
    %v823 = vpack.c.b16 %v761, %v759
    %v824 = vpack.c.b16 %v762, %v760
    %v825 = vpack.c.b16 %v765, %v763
    %v826 = vpack.c.b16 %v766, %v764
    %v827 = vpack.c.b16 %v769, %v767
    %v828 = vpack.c.b16 %v770, %v768
    %v829 = vpack.c.b16 %v773, %v771
    %v830 = vpack.c.b16 %v774, %v772
    %v831 = vpack.c.b16 %v777, %v775
    %v832 = vpack.c.b16 %v778, %v776
    %v833 = vpack.c.b16 %v781, %v779
    %v834 = vpack.c.b16 %v782, %v780
    %v835 = vpack.c.b16 %v785, %v783
    %v836 = vpack.c.b16 %v786, %v784
    %v837 = vpack.c.b16 %v789, %v787
    %v838 = vpack.c.b16 %v790, %v788
    %v839 = vpack.c.b16 %v793, %v791
    %v840 = vpack.c.b16 %v794, %v792
    %v841 = vpack.c.b16 %v797, %v795
    %v842 = vpack.c.b16 %v798, %v796
    %v843 = vpack.c.b16 %v801, %v799
    %v844 = vpack.c.b16 %v802, %v800
    %v845 = vpack.c.b16 %v805, %v803
    %v846 = vpack.c.b16 %v806, %v804
    %v847 = vpack.c.b16 %v809, %v807
    %v848 = vpack.c.b16 %v810, %v808
    %v849 = vpack.c.b16 %v813, %v811
    %v850 = vpack.c.b16 %v814, %v812
    %v851 = vpack.c.b16 %v817, %v815
    %v852 = vpack.c.b16 %v818, %v816
    %v853 = vpack.c.b16 %v821, %v819
    %v854 = vpack.c.b16 %v822, %v820
    %887 = vmatpush.bf16.msra.mxu0 %v837
    %888 = vmatpush.bf16.msra.mxu0 %v835
    %889 = vmatpush.bf16.msra.mxu0 %v833
    %890 = vmatpush.bf16.msra.mxu0 %v831
    %891 = vmatpush.bf16.msra.mxu0 %v829
    %892 = vmatpush.bf16.msra.mxu0 %v827
    %893 = vmatpush.bf16.msra.mxu0 %v825
    %894 = vmatpush.bf16.msra.mxu0 %v823
    %895 = vmatmul.bf16.gmra.mxu0 %v693
    %v896 = vpop.f32.mrf.mxu0
    %v897 = vadd.f32 0.0, %v896
    %v898 = vpop.f32.mrf.mxu0
    %v899 = vadd.f32 0.0, %v898
    %900 = vdwg.mxu0
    %901 = vmatpush.bf16.msra.mxu0 %v853
    %902 = vmatpush.bf16.msra.mxu0 %v851
    %903 = vmatpush.bf16.msra.mxu0 %v849
    %904 = vmatpush.bf16.msra.mxu0 %v847
    %905 = vmatpush.bf16.msra.mxu0 %v845
    %906 = vmatpush.bf16.msra.mxu0 %v843
    %907 = vmatpush.bf16.msra.mxu0 %v841
    %908 = vmatpush.bf16.msra.mxu0 %v839
    %909 = vmatmul.bf16.gmra.mxu0 %v694
    %v910 = vpop.f32.mrf.mxu0
    %v911 = vadd.f32 %v897, %v910
    %v912 = vpop.f32.mrf.mxu0
    %v913 = vadd.f32 %v899, %v912
    %914 = vdwg.mxu0
    %915 = vmatpush.bf16.msra.mxu0 %v838
    %916 = vmatpush.bf16.msra.mxu0 %v836
    %917 = vmatpush.bf16.msra.mxu0 %v834
    %918 = vmatpush.bf16.msra.mxu0 %v832
    %919 = vmatpush.bf16.msra.mxu0 %v830
    %920 = vmatpush.bf16.msra.mxu0 %v828
    %921 = vmatpush.bf16.msra.mxu0 %v826
    %922 = vmatpush.bf16.msra.mxu0 %v824
    %923 = vmatmul.bf16.gmra.mxu0 %v693
    %v924 = vpop.f32.mrf.mxu0
    %v925 = vadd.f32 0.0, %v924
    %v926 = vpop.f32.mrf.mxu0
    %v927 = vadd.f32 0.0, %v926
    %928 = vdwg.mxu0
    %929 = vmatpush.bf16.msra.mxu0 %v854
    %930 = vmatpush.bf16.msra.mxu0 %v852
    %931 = vmatpush.bf16.msra.mxu0 %v850
    %932 = vmatpush.bf16.msra.mxu0 %v848
    %933 = vmatpush.bf16.msra.mxu0 %v846
    %934 = vmatpush.bf16.msra.mxu0 %v844
    %935 = vmatpush.bf16.msra.mxu0 %v842
    %936 = vmatpush.bf16.msra.mxu0 %v840
    %937 = vmatmul.bf16.gmra.mxu0 %v694
    %v938 = vpop.f32.mrf.mxu0
    %v939 = vadd.f32 %v925, %v938
    %v940 = vpop.f32.mrf.mxu0
    %v941 = vadd.f32 %v927, %v940
    %942 = vdwg.mxu0
    %943 = vst [vmem:[#allocation10] sm:$0xff] %v911
    %944 = vst [vmem:[#allocation10 + $0x8] sm:$0xff] %v939
    %945 = vst [vmem:[#allocation10 + $0x10] sm:$0xff] %v913
    %946 = vst [vmem:[#allocation10 + $0x18] sm:$0xff] %v941
    // Predicated region
    $region42: #{tpu_custom_call.1} parent=1 // pred_check
      _
    $region43: #{tpu_custom_call.1} parent=1 // pred_check_branch
      %948 = sbr.rel (0) target = $region45
    $region44: #{tpu_custom_call.1} parent=1 // pred_region
      %950 = vsyncadd [#allocation4], 0
      %s951 = sshll.u32 [#allocation10], 4
      %s952 = int_to_ptr.vmem [resolvable:$true] %s951
      %s953 = sshll.u32 %s6, 4
      %s954 = int_to_ptr.hbm [resolvable:$true] %s953
      %959 = dma.vmem_to_hbm [thread:$0]  %s952, 512, %s954, [#allocation4], 256, 256, 16
    $region45: #{tpu_custom_call.1} parent=1 // pred_fallthru
      _
    // Predicated region
    $region46: #{tpu_custom_call.1} parent=1 // pred_check
      _
    $region47: #{tpu_custom_call.1} parent=1 // pred_check_branch
      %961 = sbr.rel (0) target = $region49
    $region48: #{tpu_custom_call.1} parent=1 // pred_region
      %963 = dma.done [#allocation4], 512
    $region49: #{tpu_custom_call.1} parent=1 // pred_fallthru
      _
    %964 = vsyncpa [#allocation3], 1
    %965 = vsyncpa [#allocation6], 1
    %966 = vsyncpa [#allocation9], 1
    %967 = vsyncpa [#allocation4], 1

</llo_original>
